<compile_context>
chip_gen: v5e
topology: v5e:2x2
jax: 0.10.0
libtpu: 0.0.40
codegen_flags: <defaults>
</compile_context>

<pallas_src>
import jax
import jax.numpy as jnp
from jax import lax
from jax.experimental import pallas as pl
from jax.experimental.pallas import tpu as pltpu


# ---------------------------------------------------------------------------
# Kernel
# ---------------------------------------------------------------------------
def _biddpm_kernel(x_ref, r_ref, c_ref, wx_ref, wlf_ref, b1_ref,
                   w2_ref, b2_ref, out_ref):
    """Fused low-rank fft-split + folded augment + synthetic HF-MLP.

    One grid step handles a (Bb, T, D) batch block.  The body row-chunks over
    the Bb batch elements so nothing of size (Bb*T, H) is ever live, and the
    LF contribution is reassociated into hidden space:
        LF @ Wlf == C @ ((R @ x) @ Wlf)
    which removes both the (T, D) low-pass intermediate and one full
    (T, D) @ (D, H) matmul per batch element.
    """
    Bb, T, D = x_ref.shape
    H = wx_ref.shape[1]
    cd = wx_ref.dtype                       # matmul operand dtype (bf16 default)

    # Resident operands (single-buffered via pl.Buffered(1) in the wrapper).
    R = r_ref[...]                          # (Kf, T)  f32 analysis factor
    C = c_ref[...]                          # (T, Kf)  f32 synthesis factor
    Wx = wx_ref[...]                        # (D, H)   cd  (alpha/HF folded in)
    Wlf = wlf_ref[...]                      # (D, H)   cd
    W2 = w2_ref[...]                        # (H, D)   cd
    # Hoist the bias broadcasts out of the per-batch loop: broadcast_in_dim is
    # not CSE'd, so re-broadcasting per chunk would add VPU filler ops.
    b1 = jnp.broadcast_to(b1_ref[...], (T, H))      # f32
    b2 = jnp.broadcast_to(b2_ref[...], (T, D))      # f32

    def body(b, carry):
        xb = x_ref[b]                                               # (T, D) cd
        # --- LF path, reassociated into hidden space. Fourier factors and the
        #     analysis matmul stay in f32 so bf16 operands do not pollute the
        #     low-pass split (the cost is tiny: Kf*T*D flops). ----------------
        tmp = jnp.dot(R, xb.astype(jnp.float32),
                      preferred_element_type=jnp.float32)           # (Kf, D)
        tmp2 = jnp.dot(tmp.astype(cd), Wlf,
                       preferred_element_type=jnp.float32)          # (Kf, H)
        h_lf = jnp.dot(C, tmp2, preferred_element_type=jnp.float32)  # (T, H)
        # --- main path: h = relu(x @ Wx + h_lf + b1) -------------------------
        hx = jnp.dot(xb, Wx, preferred_element_type=jnp.float32)    # (T, H)
        h = jnp.maximum(hx + h_lf + b1, 0.0)
        # --- output projection (masked store accepted when D < 128) ---------
        o = jnp.dot(h.astype(cd), W2,
                    preferred_element_type=jnp.float32) + b2        # (T, D)
        out_ref[b] = o.astype(out_ref.dtype)
        return carry

    lax.fori_loop(0, Bb, body, 0, unroll=True)


# ---------------------------------------------------------------------------
# Low-rank factorization of the rfft/irfft low-pass projection along time.
#   irfft(mask * rfft(x, axis=0), n=T, axis=0) == C @ (R @ x)
# with rank Kf = 2 * n_kept_freqs (cos/sin basis of the kept frequencies).
# Correct for both even T (Nyquist bin gets weight 1/T) and odd T (never hit).
# ---------------------------------------------------------------------------
def lowpass_factors(T, threshold):
    kept = int(min(threshold, T // 2 + 1))
    k = jnp.arange(kept, dtype=jnp.float32)
    t = jnp.arange(T, dtype=jnp.float32)
    ang = 2.0 * jnp.pi * k[:, None] * t[None, :] / T          # (kept, T)
    cos = jnp.cos(ang)
    sin = jnp.sin(ang)
    # analysis:  a_k = sum_t x_t cos,  b_k = sum_t x_t sin
    R = jnp.concatenate([cos, sin], axis=0)                    # (2*kept, T)
    # synthesis weights: 1/T for k=0 and Nyquist, 2/T otherwise
    w = jnp.where((k == 0) | (2.0 * k == T), 1.0, 2.0) / T
    C = jnp.concatenate([w[:, None] * cos, w[:, None] * sin], axis=0).T
    # pad the rank dim up to a multiple of 8 (f32 sublane tile; zero rows/cols
    # contribute nothing)
    Kf = R.shape[0]
    Kf_pad = max(8, ((Kf + 7) // 8) * 8)
    if Kf_pad != Kf:
        R = jnp.concatenate([R, jnp.zeros((Kf_pad - Kf, T), R.dtype)], axis=0)
        C = jnp.concatenate([C, jnp.zeros((T, Kf_pad - Kf), C.dtype)], axis=1)
    return C.astype(jnp.float32), R.astype(jnp.float32)        # (T,Kf),(Kf,T)


def _weight_spec(shape, single_buffer):
    index_map = lambda b: (0,) * len(shape)
    if single_buffer:
        # Constant block index -> DMA once; single-buffering halves the
        # resident-weight VMEM footprint (frees room for a larger batch block).
        return pl.BlockSpec(shape, index_map, pipeline_mode=pl.Buffered(1))
    return pl.BlockSpec(shape, index_map)


# ---------------------------------------------------------------------------
# Wrapper
# ---------------------------------------------------------------------------
def biddpm_forward(x, w1a, w1b, b1, w2, b2, *, split_threshold,
                   alpha=1.0, mode='split', batch_block=None,
                   matmul_dtype=jnp.bfloat16, out_dtype=jnp.float32):
    B, T, D = x.shape
    H = w1a.shape[1]

    # Low-rank low-pass factors (rank ~ 2*threshold instead of dense TxT).
    C, R = lowpass_factors(T, split_threshold)
    Kf = R.shape[0]

    # Fold augment_alpha and HF = x - LF into the first-layer weights:
    #   split:     input = a*(x - LF)        -> Wx = a*W1a, Wlf = W1b - a*W1a
    #   non-split: input = a*(x - LF) + LF   -> Wx = a*W1a, Wlf = W1b + (1-a)*W1a
    a = jnp.float32(alpha)
    wx = a * w1a
    wlf = (w1b - a * w1a) if mode == 'split' else (w1b + (1.0 - a) * w1a)

    cd = jnp.dtype(matmul_dtype)
    in_bytes = cd.itemsize
    out_bytes = jnp.dtype(out_dtype).itemsize

    def vmem_estimate(bb, weight_bufs=2):
        weights = weight_bufs * (2 * Kf * T * 4                  # R, C (f32)
                                 + 2 * D * H * in_bytes          # Wx, Wlf
                                 + H * D * in_bytes              # W2
                                 + (H + D) * 4)                  # b1, b2
        io_bufs = 2 * bb * T * D * in_bytes + 2 * bb * T * D * out_bytes
        scratch = T * (2 * H + 2 * D) * 4 + Kf * (D + H) * 4     # per-batch f32 temps
        return weights + io_bufs + scratch

    # Batch block: largest divisor of B that (a) keeps >= 4 grid steps so the
    # grid actually pipelines and v7x can shard the "parallel" axis across its
    # two TensorCores, and (b) fits a conservative 32 MiB VMEM budget (safe on
    # v7x's 64 MiB physical VMEM and under v5e's tighter scoped default once
    # vmem_limit_bytes is raised below).
    if batch_block is None:
        budget = 32 * 1024 * 1024
        Bb = 1
        for d in range(1, B + 1):
            if B % d != 0:
                continue
            if (B // d) < min(4, B):
                continue
            if vmem_estimate(d) <= budget:
                Bb = d
    else:
        Bb = int(batch_block)
    assert B % Bb == 0, "batch must be divisible by batch_block"

    vmem_limit = int(min(max(2 * vmem_estimate(Bb), 24 << 20), 48 << 20))

    args = (
        x.astype(cd),
        R,                      # keep Fourier factors in f32 even on bf16 path
        C,
        wx.astype(cd),
        wlf.astype(cd),
        jnp.reshape(b1, (1, H)).astype(jnp.float32),
        w2.astype(cd),
        jnp.reshape(b2, (1, D)).astype(jnp.float32),
    )

    def run(single_buffer_weights):
        in_specs = [
            pl.BlockSpec((Bb, T, D), lambda i: (i, 0, 0)),      # x batch block
            _weight_spec((Kf, T), single_buffer_weights),       # R (resident)
            _weight_spec((T, Kf), single_buffer_weights),       # C (resident)
            _weight_spec((D, H), single_buffer_weights),        # Wx
            _weight_spec((D, H), single_buffer_weights),        # Wlf
            _weight_spec((1, H), single_buffer_weights),        # b1
            _weight_spec((H, D), single_buffer_weights),        # W2
            _weight_spec((1, D), single_buffer_weights),        # b2
        ]
        return pl.pallas_call(
            _biddpm_kernel,
            out_shape=jax.ShapeDtypeStruct((B, T, D), out_dtype),
            grid=(B // Bb,),
            in_specs=in_specs,
            out_specs=pl.BlockSpec((Bb, T, D), lambda i: (i, 0, 0)),
            compiler_params=pltpu.CompilerParams(
                dimension_semantics=("parallel",),
                vmem_limit_bytes=vmem_limit),
        )(*args)

    try:
        return run(single_buffer_weights=True)
    except Exception:
        # TODO(synk): pipeline_mode=pl.Buffered(1) not accepted on this JAX
        # build; fall back to default double-buffered weight blocks.
        return run(single_buffer_weights=False)


# ---------------------------------------------------------------------------
# Demo / correctness check
# ---------------------------------------------------------------------------
if __name__ == "__main__":
    B, T, D, H = 8, 16, 8, 32
    split_threshold = 4

    key = jax.random.PRNGKey(0)
    k1, k2, k3, k4 = jax.random.split(key, 4)
    x = jax.random.normal(k1, (B, T, D), jnp.float32)

    # deterministic synthetic parameters for the stand-in HF diffusion model
    w1a = jax.random.normal(k2, (D, H), jnp.float32) * 0.1
    w1b = jax.random.normal(k3, (D, H), jnp.float32) * 0.1
    b1 = jnp.zeros((1, H), jnp.float32)
    w2 = jax.random.normal(k4, (H, D), jnp.float32) * 0.1
    b2 = jnp.zeros((1, D), jnp.float32)

    # pure-JAX reference (rfft/irfft split + same synthetic model)
    def reference(mode, alpha):
        freq = jnp.fft.rfft(x, axis=1)
        mask = (jnp.arange(T // 2 + 1) < split_threshold)[None, :, None]
        LF = jnp.fft.irfft(freq * mask, n=T, axis=1)
        HF = x - LF
        inp = HF * alpha
        if mode != 'split':
            inp = inp + LF
        h = jnp.maximum(inp @ w1a + LF @ w1b + b1, 0.0)
        return h @ w2 + b2

    # 1) f32 matmuls, split mode (tight tolerance); default batch_block picker
    #    chooses Bb=2 -> grid=(4,), even and "parallel".
    ref_split = reference('split', 1.0)
    out = jax.block_until_ready(biddpm_forward(
        x, w1a, w1b, b1, w2, b2, split_threshold=split_threshold,
        alpha=1.0, mode='split', matmul_dtype=jnp.float32))
    assert jnp.allclose(out, ref_split, atol=1e-3, rtol=1e-3), \
        f"f32/split max abs err {float(jnp.max(jnp.abs(out - ref_split)))}"

    # 2) f32 matmuls, non-split mode with alpha != 1 (other weight-folding branch)
    ref_add = reference('add', 0.7)
    out_add = jax.block_until_ready(biddpm_forward(
        x, w1a, w1b, b1, w2, b2, split_threshold=split_threshold,
        alpha=0.7, mode='add', matmul_dtype=jnp.float32))
    assert jnp.allclose(out_add, ref_add, atol=1e-3, rtol=1e-3), \
        f"f32/add max abs err {float(jnp.max(jnp.abs(out_add - ref_add)))}"

    # 3) default bf16 matmul operands (f32 accumulation, f32 Fourier factors)
    out_bf16 = jax.block_until_ready(biddpm_forward(
        x, w1a, w1b, b1, w2, b2, split_threshold=split_threshold,
        alpha=1.0, mode='split'))
    assert jnp.allclose(out_bf16, ref_split, atol=5e-2, rtol=5e-2), \
        f"bf16/split max abs err {float(jnp.max(jnp.abs(out_bf16 - ref_split)))}"

    print("KERNEL_OK")
</pallas_src>

<mosaic_0001>
module attributes {stable_mosaic.version = 11 : i64} {
  func.func @_biddpm_kernel(%arg0: i32, %arg1: memref<2x16x8xf32, #tpu.memory_space<vmem>>, %arg2: memref<8x16xf32, #tpu.memory_space<vmem>>, %arg3: memref<16x8xf32, #tpu.memory_space<vmem>>, %arg4: memref<8x32xf32, #tpu.memory_space<vmem>>, %arg5: memref<8x32xf32, #tpu.memory_space<vmem>>, %arg6: memref<1x32xf32, #tpu.memory_space<vmem>>, %arg7: memref<32x8xf32, #tpu.memory_space<vmem>>, %arg8: memref<1x8xf32, #tpu.memory_space<vmem>>, %arg9: memref<2x16x8xf32, #tpu.memory_space<vmem>>) attributes {dimension_semantics = [#tpu.dimension_semantics<parallel>], iteration_bounds = array<i64: 4>, scalar_prefetch = 0 : i64, scratch_operands = 0 : i64, tpu.core_type = #tpu.core_type<tc>, window_params = [{transform_indices = @transform_0, window_bounds = array<i64: 2, 16, 8>}, {pipeline_mode = #tpu.pipeline_mode<synchronous>, transform_indices = @transform_1, window_bounds = array<i64: 8, 16>}, {pipeline_mode = #tpu.pipeline_mode<synchronous>, transform_indices = @transform_2, window_bounds = array<i64: 16, 8>}, {pipeline_mode = #tpu.pipeline_mode<synchronous>, transform_indices = @transform_3, window_bounds = array<i64: 8, 32>}, {pipeline_mode = #tpu.pipeline_mode<synchronous>, transform_indices = @transform_4, window_bounds = array<i64: 8, 32>}, {pipeline_mode = #tpu.pipeline_mode<synchronous>, transform_indices = @transform_5, window_bounds = array<i64: 1, 32>}, {pipeline_mode = #tpu.pipeline_mode<synchronous>, transform_indices = @transform_6, window_bounds = array<i64: 32, 8>}, {pipeline_mode = #tpu.pipeline_mode<synchronous>, transform_indices = @transform_7, window_bounds = array<i64: 1, 8>}, {transform_indices = @transform_8, window_bounds = array<i64: 2, 16, 8>}]} {
    %c0 = arith.constant 0 : index
    %c0_0 = arith.constant 0 : index
    %0 = vector.load %arg2[%c0, %c0_0] : memref<8x16xf32, #tpu.memory_space<vmem>>, vector<8x16xf32>
    %c0_1 = arith.constant 0 : index
    %c0_2 = arith.constant 0 : index
    %1 = vector.load %arg3[%c0_1, %c0_2] : memref<16x8xf32, #tpu.memory_space<vmem>>, vector<16x8xf32>
    %c0_3 = arith.constant 0 : index
    %c0_4 = arith.constant 0 : index
    %2 = vector.load %arg4[%c0_3, %c0_4] : memref<8x32xf32, #tpu.memory_space<vmem>>, vector<8x32xf32>
    %c0_5 = arith.constant 0 : index
    %c0_6 = arith.constant 0 : index
    %3 = vector.load %arg5[%c0_5, %c0_6] : memref<8x32xf32, #tpu.memory_space<vmem>>, vector<8x32xf32>
    %c0_7 = arith.constant 0 : index
    %c0_8 = arith.constant 0 : index
    %4 = vector.load %arg7[%c0_7, %c0_8] : memref<32x8xf32, #tpu.memory_space<vmem>>, vector<32x8xf32>
    %c0_9 = arith.constant 0 : index
    %c0_10 = arith.constant 0 : index
    %5 = vector.load %arg6[%c0_9, %c0_10] : memref<1x32xf32, #tpu.memory_space<vmem>>, vector<1x32xf32>
    %6 = vector.shape_cast %5 : vector<1x32xf32> to vector<1x32xf32>
    %7 = vector.broadcast %6 : vector<1x32xf32> to vector<16x32xf32>
    %c0_11 = arith.constant 0 : index
    %c0_12 = arith.constant 0 : index
    %8 = vector.load %arg8[%c0_11, %c0_12] : memref<1x8xf32, #tpu.memory_space<vmem>>, vector<1x8xf32>
    %9 = vector.shape_cast %8 : vector<1x8xf32> to vector<1x8xf32>
    %10 = vector.broadcast %9 : vector<1x8xf32> to vector<16x8xf32>
    %c0_i32 = arith.constant 0 : i32
    %11 = arith.index_cast %c0_i32 : i32 to index
    %c0_13 = arith.constant 0 : index
    %c0_14 = arith.constant 0 : index
    %12 = vector.load %arg1[%11, %c0_13, %c0_14] : memref<2x16x8xf32, #tpu.memory_space<vmem>>, vector<1x16x8xf32>
    %13 = vector.shape_cast %12 : vector<1x16x8xf32> to vector<16x8xf32>
    %cst = arith.constant dense<0.000000e+00> : vector<8x8xf32>
    %14 = tpu.matmul %0, %13, %cst {dimension_numbers = #tpu.dot_dimension_numbers<[1], [0], [0], [1], [0, 0, 1, 1], [], []>} : vector<8x16xf32>, vector<16x8xf32>, vector<8x8xf32> -> vector<8x8xf32>
    %cst_15 = arith.constant dense<0.000000e+00> : vector<8x32xf32>
    %15 = tpu.matmul %14, %3, %cst_15 {dimension_numbers = #tpu.dot_dimension_numbers<[1], [0], [0], [1], [0, 0, 1, 1], [], []>} : vector<8x8xf32>, vector<8x32xf32>, vector<8x32xf32> -> vector<8x32xf32>
    %cst_16 = arith.constant dense<0.000000e+00> : vector<16x32xf32>
    %16 = tpu.matmul %1, %15, %cst_16 {dimension_numbers = #tpu.dot_dimension_numbers<[1], [0], [0], [1], [0, 0, 1, 1], [], []>} : vector<16x8xf32>, vector<8x32xf32>, vector<16x32xf32> -> vector<16x32xf32>
    %cst_17 = arith.constant dense<0.000000e+00> : vector<16x32xf32>
    %17 = tpu.matmul %13, %2, %cst_17 {dimension_numbers = #tpu.dot_dimension_numbers<[1], [0], [0], [1], [0, 0, 1, 1], [], []>} : vector<16x8xf32>, vector<8x32xf32>, vector<16x32xf32> -> vector<16x32xf32>
    %18 = arith.addf %17, %16 : vector<16x32xf32>
    %19 = arith.addf %18, %7 : vector<16x32xf32>
    %cst_18 = arith.constant 0.000000e+00 : f32
    %20 = vector.broadcast %cst_18 : f32 to vector<16x32xf32>
    %21 = arith.maximumf %19, %20 : vector<16x32xf32>
    %cst_19 = arith.constant dense<0.000000e+00> : vector<16x8xf32>
    %22 = tpu.matmul %21, %4, %cst_19 {dimension_numbers = #tpu.dot_dimension_numbers<[1], [0], [0], [1], [0, 0, 1, 1], [], []>} : vector<16x32xf32>, vector<32x8xf32>, vector<16x8xf32> -> vector<16x8xf32>
    %23 = arith.addf %22, %10 : vector<16x8xf32>
    %24 = arith.index_cast %c0_i32 : i32 to index
    %c0_20 = arith.constant 0 : index
    %c0_21 = arith.constant 0 : index
    %25 = vector.load %arg9[%24, %c0_20, %c0_21] : memref<2x16x8xf32, #tpu.memory_space<vmem>>, vector<1x16x8xf32>
    %26 = vector.shape_cast %25 : vector<1x16x8xf32> to vector<16x8xf32>
    %27 = vector.shape_cast %23 : vector<16x8xf32> to vector<1x16x8xf32>
    tpu.vector_store %arg9[%24, %c0_20, %c0_21], %27 {strides = array<i32>} : memref<2x16x8xf32, #tpu.memory_space<vmem>>, vector<1x16x8xf32>,
    %c1_i32 = arith.constant 1 : i32
    %28 = arith.index_cast %c1_i32 : i32 to index
    %c0_22 = arith.constant 0 : index
    %c0_23 = arith.constant 0 : index
    %29 = vector.load %arg1[%28, %c0_22, %c0_23] : memref<2x16x8xf32, #tpu.memory_space<vmem>>, vector<1x16x8xf32>
    %30 = vector.shape_cast %29 : vector<1x16x8xf32> to vector<16x8xf32>
    %cst_24 = arith.constant dense<0.000000e+00> : vector<8x8xf32>
    %31 = tpu.matmul %0, %30, %cst_24 {dimension_numbers = #tpu.dot_dimension_numbers<[1], [0], [0], [1], [0, 0, 1, 1], [], []>} : vector<8x16xf32>, vector<16x8xf32>, vector<8x8xf32> -> vector<8x8xf32>
    %cst_25 = arith.constant dense<0.000000e+00> : vector<8x32xf32>
    %32 = tpu.matmul %31, %3, %cst_25 {dimension_numbers = #tpu.dot_dimension_numbers<[1], [0], [0], [1], [0, 0, 1, 1], [], []>} : vector<8x8xf32>, vector<8x32xf32>, vector<8x32xf32> -> vector<8x32xf32>
    %cst_26 = arith.constant dense<0.000000e+00> : vector<16x32xf32>
    %33 = tpu.matmul %1, %32, %cst_26 {dimension_numbers = #tpu.dot_dimension_numbers<[1], [0], [0], [1], [0, 0, 1, 1], [], []>} : vector<16x8xf32>, vector<8x32xf32>, vector<16x32xf32> -> vector<16x32xf32>
    %cst_27 = arith.constant dense<0.000000e+00> : vector<16x32xf32>
    %34 = tpu.matmul %30, %2, %cst_27 {dimension_numbers = #tpu.dot_dimension_numbers<[1], [0], [0], [1], [0, 0, 1, 1], [], []>} : vector<16x8xf32>, vector<8x32xf32>, vector<16x32xf32> -> vector<16x32xf32>
    %35 = arith.addf %34, %33 : vector<16x32xf32>
    %36 = arith.addf %35, %7 : vector<16x32xf32>
    %cst_28 = arith.constant 0.000000e+00 : f32
    %37 = vector.broadcast %cst_28 : f32 to vector<16x32xf32>
    %38 = arith.maximumf %36, %37 : vector<16x32xf32>
    %cst_29 = arith.constant dense<0.000000e+00> : vector<16x8xf32>
    %39 = tpu.matmul %38, %4, %cst_29 {dimension_numbers = #tpu.dot_dimension_numbers<[1], [0], [0], [1], [0, 0, 1, 1], [], []>} : vector<16x32xf32>, vector<32x8xf32>, vector<16x8xf32> -> vector<16x8xf32>
    %40 = arith.addf %39, %10 : vector<16x8xf32>
    %41 = arith.index_cast %c1_i32 : i32 to index
    %c0_30 = arith.constant 0 : index
    %c0_31 = arith.constant 0 : index
    %42 = vector.load %arg9[%41, %c0_30, %c0_31] : memref<2x16x8xf32, #tpu.memory_space<vmem>>, vector<1x16x8xf32>
    %43 = vector.shape_cast %42 : vector<1x16x8xf32> to vector<16x8xf32>
    %44 = vector.shape_cast %40 : vector<16x8xf32> to vector<1x16x8xf32>
    tpu.vector_store %arg9[%41, %c0_30, %c0_31], %44 {strides = array<i32>} : memref<2x16x8xf32, #tpu.memory_space<vmem>>, vector<1x16x8xf32>,
    %c2_i32 = arith.constant 2 : i32
    return
  }
  func.func @transform_0(%arg0: i32) -> (i32, i32, i32) {
    %c0_i32 = arith.constant 0 : i32
    %c0_i32_0 = arith.constant 0 : i32
    %c0_i32_1 = arith.constant 0 : i32
    return %arg0, %c0_i32, %c0_i32_0 : i32, i32, i32
  }
  func.func @transform_1(%arg0: i32) -> (i32, i32) {
    %c0_i32 = arith.constant 0 : i32
    %c0_i32_0 = arith.constant 0 : i32
    %c0_i32_1 = arith.constant 0 : i32
    return %c0_i32, %c0_i32_0 : i32, i32
  }
  func.func @transform_2(%arg0: i32) -> (i32, i32) {
    %c0_i32 = arith.constant 0 : i32
    %c0_i32_0 = arith.constant 0 : i32
    %c0_i32_1 = arith.constant 0 : i32
    return %c0_i32, %c0_i32_0 : i32, i32
  }
  func.func @transform_3(%arg0: i32) -> (i32, i32) {
    %c0_i32 = arith.constant 0 : i32
    %c0_i32_0 = arith.constant 0 : i32
    %c0_i32_1 = arith.constant 0 : i32
    return %c0_i32, %c0_i32_0 : i32, i32
  }
  func.func @transform_4(%arg0: i32) -> (i32, i32) {
    %c0_i32 = arith.constant 0 : i32
    %c0_i32_0 = arith.constant 0 : i32
    %c0_i32_1 = arith.constant 0 : i32
    return %c0_i32, %c0_i32_0 : i32, i32
  }
  func.func @transform_5(%arg0: i32) -> (i32, i32) {
    %c0_i32 = arith.constant 0 : i32
    %c0_i32_0 = arith.constant 0 : i32
    %c0_i32_1 = arith.constant 0 : i32
    return %c0_i32, %c0_i32_0 : i32, i32
  }
  func.func @transform_6(%arg0: i32) -> (i32, i32) {
    %c0_i32 = arith.constant 0 : i32
    %c0_i32_0 = arith.constant 0 : i32
    %c0_i32_1 = arith.constant 0 : i32
    return %c0_i32, %c0_i32_0 : i32, i32
  }
  func.func @transform_7(%arg0: i32) -> (i32, i32) {
    %c0_i32 = arith.constant 0 : i32
    %c0_i32_0 = arith.constant 0 : i32
    %c0_i32_1 = arith.constant 0 : i32
    return %c0_i32, %c0_i32_0 : i32, i32
  }
  func.func @transform_8(%arg0: i32) -> (i32, i32, i32) {
    %c0_i32 = arith.constant 0 : i32
    %c0_i32_0 = arith.constant 0 : i32
    %c0_i32_1 = arith.constant 0 : i32
    return %arg0, %c0_i32, %c0_i32_0 : i32, i32, i32
  }
}

module attributes {stable_mosaic.version = 11 : i64} {
  func.func @_biddpm_kernel(%arg0: i32, %arg1: memref<2x16x8xf32, #tpu.memory_space<vmem>>, %arg2: memref<8x16xf32, #tpu.memory_space<vmem>>, %arg3: memref<16x8xf32, #tpu.memory_space<vmem>>, %arg4: memref<8x32xf32, #tpu.memory_space<vmem>>, %arg5: memref<8x32xf32, #tpu.memory_space<vmem>>, %arg6: memref<1x32xf32, #tpu.memory_space<vmem>>, %arg7: memref<32x8xf32, #tpu.memory_space<vmem>>, %arg8: memref<1x8xf32, #tpu.memory_space<vmem>>, %arg9: memref<2x16x8xf32, #tpu.memory_space<vmem>>) attributes {dimension_semantics = [#tpu.dimension_semantics<parallel>], iteration_bounds = array<i64: 4>, scalar_prefetch = 0 : i64, scratch_operands = 0 : i64, tpu.core_type = #tpu.core_type<tc>, window_params = [{transform_indices = @transform_0, window_bounds = array<i64: 2, 16, 8>}, {pipeline_mode = #tpu.pipeline_mode<synchronous>, transform_indices = @transform_1, window_bounds = array<i64: 8, 16>}, {pipeline_mode = #tpu.pipeline_mode<synchronous>, transform_indices = @transform_2, window_bounds = array<i64: 16, 8>}, {pipeline_mode = #tpu.pipeline_mode<synchronous>, transform_indices = @transform_3, window_bounds = array<i64: 8, 32>}, {pipeline_mode = #tpu.pipeline_mode<synchronous>, transform_indices = @transform_4, window_bounds = array<i64: 8, 32>}, {pipeline_mode = #tpu.pipeline_mode<synchronous>, transform_indices = @transform_5, window_bounds = array<i64: 1, 32>}, {pipeline_mode = #tpu.pipeline_mode<synchronous>, transform_indices = @transform_6, window_bounds = array<i64: 32, 8>}, {pipeline_mode = #tpu.pipeline_mode<synchronous>, transform_indices = @transform_7, window_bounds = array<i64: 1, 8>}, {transform_indices = @transform_8, window_bounds = array<i64: 2, 16, 8>}]} {
    %c0 = arith.constant 0 : index
    %c0_0 = arith.constant 0 : index
    %0 = vector.load %arg2[%c0, %c0_0] : memref<8x16xf32, #tpu.memory_space<vmem>>, vector<8x16xf32>
    %c0_1 = arith.constant 0 : index
    %c0_2 = arith.constant 0 : index
    %1 = vector.load %arg3[%c0_1, %c0_2] : memref<16x8xf32, #tpu.memory_space<vmem>>, vector<16x8xf32>
    %c0_3 = arith.constant 0 : index
    %c0_4 = arith.constant 0 : index
    %2 = vector.load %arg4[%c0_3, %c0_4] : memref<8x32xf32, #tpu.memory_space<vmem>>, vector<8x32xf32>
    %c0_5 = arith.constant 0 : index
    %c0_6 = arith.constant 0 : index
    %3 = vector.load %arg5[%c0_5, %c0_6] : memref<8x32xf32, #tpu.memory_space<vmem>>, vector<8x32xf32>
    %c0_7 = arith.constant 0 : index
    %c0_8 = arith.constant 0 : index
    %4 = vector.load %arg7[%c0_7, %c0_8] : memref<32x8xf32, #tpu.memory_space<vmem>>, vector<32x8xf32>
    %c0_9 = arith.constant 0 : index
    %c0_10 = arith.constant 0 : index
    %5 = vector.load %arg6[%c0_9, %c0_10] : memref<1x32xf32, #tpu.memory_space<vmem>>, vector<1x32xf32>
    %6 = vector.shape_cast %5 : vector<1x32xf32> to vector<1x32xf32>
    %7 = vector.broadcast %6 : vector<1x32xf32> to vector<16x32xf32>
    %c0_11 = arith.constant 0 : index
    %c0_12 = arith.constant 0 : index
    %8 = vector.load %arg8[%c0_11, %c0_12] : memref<1x8xf32, #tpu.memory_space<vmem>>, vector<1x8xf32>
    %9 = vector.shape_cast %8 : vector<1x8xf32> to vector<1x8xf32>
    %10 = vector.broadcast %9 : vector<1x8xf32> to vector<16x8xf32>
    %c0_i32 = arith.constant 0 : i32
    %11 = arith.index_cast %c0_i32 : i32 to index
    %c0_13 = arith.constant 0 : index
    %c0_14 = arith.constant 0 : index
    %12 = vector.load %arg1[%11, %c0_13, %c0_14] : memref<2x16x8xf32, #tpu.memory_space<vmem>>, vector<1x16x8xf32>
    %13 = vector.shape_cast %12 : vector<1x16x8xf32> to vector<16x8xf32>
    %cst = arith.constant dense<0.000000e+00> : vector<8x8xf32>
    %14 = tpu.matmul %0, %13, %cst {dimension_numbers = #tpu.dot_dimension_numbers<[1], [0], [0], [1], [0, 0, 1, 1], [], []>} : vector<8x16xf32>, vector<16x8xf32>, vector<8x8xf32> -> vector<8x8xf32>
    %cst_15 = arith.constant dense<0.000000e+00> : vector<8x32xf32>
    %15 = tpu.matmul %14, %3, %cst_15 {dimension_numbers = #tpu.dot_dimension_numbers<[1], [0], [0], [1], [0, 0, 1, 1], [], []>} : vector<8x8xf32>, vector<8x32xf32>, vector<8x32xf32> -> vector<8x32xf32>
    %cst_16 = arith.constant dense<0.000000e+00> : vector<16x32xf32>
    %16 = tpu.matmul %1, %15, %cst_16 {dimension_numbers = #tpu.dot_dimension_numbers<[1], [0], [0], [1], [0, 0, 1, 1], [], []>} : vector<16x8xf32>, vector<8x32xf32>, vector<16x32xf32> -> vector<16x32xf32>
    %cst_17 = arith.constant dense<0.000000e+00> : vector<16x32xf32>
    %17 = tpu.matmul %13, %2, %cst_17 {dimension_numbers = #tpu.dot_dimension_numbers<[1], [0], [0], [1], [0, 0, 1, 1], [], []>} : vector<16x8xf32>, vector<8x32xf32>, vector<16x32xf32> -> vector<16x32xf32>
    %18 = arith.addf %17, %16 : vector<16x32xf32>
    %19 = arith.addf %18, %7 : vector<16x32xf32>
    %cst_18 = arith.constant 0.000000e+00 : f32
    %20 = vector.broadcast %cst_18 : f32 to vector<16x32xf32>
    %21 = arith.maximumf %19, %20 : vector<16x32xf32>
    %cst_19 = arith.constant dense<0.000000e+00> : vector<16x8xf32>
    %22 = tpu.matmul %21, %4, %cst_19 {dimension_numbers = #tpu.dot_dimension_numbers<[1], [0], [0], [1], [0, 0, 1, 1], [], []>} : vector<16x32xf32>, vector<32x8xf32>, vector<16x8xf32> -> vector<16x8xf32>
    %23 = arith.addf %22, %10 : vector<16x8xf32>
    %24 = arith.index_cast %c0_i32 : i32 to index
    %c0_20 = arith.constant 0 : index
    %c0_21 = arith.constant 0 : index
    %25 = vector.load %arg9[%24, %c0_20, %c0_21] : memref<2x16x8xf32, #tpu.memory_space<vmem>>, vector<1x16x8xf32>
    %26 = vector.shape_cast %25 : vector<1x16x8xf32> to vector<16x8xf32>
    %27 = vector.shape_cast %23 : vector<16x8xf32> to vector<1x16x8xf32>
    tpu.vector_store %arg9[%24, %c0_20, %c0_21], %27 {strides = array<i32>} : memref<2x16x8xf32, #tpu.memory_space<vmem>>, vector<1x16x8xf32>,
    %c1_i32 = arith.constant 1 : i32
    %28 = arith.index_cast %c1_i32 : i32 to index
    %c0_22 = arith.constant 0 : index
    %c0_23 = arith.constant 0 : index
    %29 = vector.load %arg1[%28, %c0_22, %c0_23] : memref<2x16x8xf32, #tpu.memory_space<vmem>>, vector<1x16x8xf32>
    %30 = vector.shape_cast %29 : vector<1x16x8xf32> to vector<16x8xf32>
    %cst_24 = arith.constant dense<0.000000e+00> : vector<8x8xf32>
    %31 = tpu.matmul %0, %30, %cst_24 {dimension_numbers = #tpu.dot_dimension_numbers<[1], [0], [0], [1], [0, 0, 1, 1], [], []>} : vector<8x16xf32>, vector<16x8xf32>, vector<8x8xf32> -> vector<8x8xf32>
    %cst_25 = arith.constant dense<0.000000e+00> : vector<8x32xf32>
    %32 = tpu.matmul %31, %3, %cst_25 {dimension_numbers = #tpu.dot_dimension_numbers<[1], [0], [0], [1], [0, 0, 1, 1], [], []>} : vector<8x8xf32>, vector<8x32xf32>, vector<8x32xf32> -> vector<8x32xf32>
    %cst_26 = arith.constant dense<0.000000e+00> : vector<16x32xf32>
    %33 = tpu.matmul %1, %32, %cst_26 {dimension_numbers = #tpu.dot_dimension_numbers<[1], [0], [0], [1], [0, 0, 1, 1], [], []>} : vector<16x8xf32>, vector<8x32xf32>, vector<16x32xf32> -> vector<16x32xf32>
    %cst_27 = arith.constant dense<0.000000e+00> : vector<16x32xf32>
    %34 = tpu.matmul %30, %2, %cst_27 {dimension_numbers = #tpu.dot_dimension_numbers<[1], [0], [0], [1], [0, 0, 1, 1], [], []>} : vector<16x8xf32>, vector<8x32xf32>, vector<16x32xf32> -> vector<16x32xf32>
    %35 = arith.addf %34, %33 : vector<16x32xf32>
    %36 = arith.addf %35, %7 : vector<16x32xf32>
    %cst_28 = arith.constant 0.000000e+00 : f32
    %37 = vector.broadcast %cst_28 : f32 to vector<16x32xf32>
    %38 = arith.maximumf %36, %37 : vector<16x32xf32>
    %cst_29 = arith.constant dense<0.000000e+00> : vector<16x8xf32>
    %39 = tpu.matmul %38, %4, %cst_29 {dimension_numbers = #tpu.dot_dimension_numbers<[1], [0], [0], [1], [0, 0, 1, 1], [], []>} : vector<16x32xf32>, vector<32x8xf32>, vector<16x8xf32> -> vector<16x8xf32>
    %40 = arith.addf %39, %10 : vector<16x8xf32>
    %41 = arith.index_cast %c1_i32 : i32 to index
    %c0_30 = arith.constant 0 : index
    %c0_31 = arith.constant 0 : index
    %42 = vector.load %arg9[%41, %c0_30, %c0_31] : memref<2x16x8xf32, #tpu.memory_space<vmem>>, vector<1x16x8xf32>
    %43 = vector.shape_cast %42 : vector<1x16x8xf32> to vector<16x8xf32>
    %44 = vector.shape_cast %40 : vector<16x8xf32> to vector<1x16x8xf32>
    tpu.vector_store %arg9[%41, %c0_30, %c0_31], %44 {strides = array<i32>} : memref<2x16x8xf32, #tpu.memory_space<vmem>>, vector<1x16x8xf32>,
    %c2_i32 = arith.constant 2 : i32
    return
  }
  func.func @transform_0(%arg0: i32) -> (i32, i32, i32) {
    %c0_i32 = arith.constant 0 : i32
    %c0_i32_0 = arith.constant 0 : i32
    %c0_i32_1 = arith.constant 0 : i32
    return %arg0, %c0_i32, %c0_i32_0 : i32, i32, i32
  }
  func.func @transform_1(%arg0: i32) -> (i32, i32) {
    %c0_i32 = arith.constant 0 : i32
    %c0_i32_0 = arith.constant 0 : i32
    %c0_i32_1 = arith.constant 0 : i32
    return %c0_i32, %c0_i32_0 : i32, i32
  }
  func.func @transform_2(%arg0: i32) -> (i32, i32) {
    %c0_i32 = arith.constant 0 : i32
    %c0_i32_0 = arith.constant 0 : i32
    %c0_i32_1 = arith.constant 0 : i32
    return %c0_i32, %c0_i32_0 : i32, i32
  }
  func.func @transform_3(%arg0: i32) -> (i32, i32) {
    %c0_i32 = arith.constant 0 : i32
    %c0_i32_0 = arith.constant 0 : i32
    %c0_i32_1 = arith.constant 0 : i32
    return %c0_i32, %c0_i32_0 : i32, i32
  }
  func.func @transform_4(%arg0: i32) -> (i32, i32) {
    %c0_i32 = arith.constant 0 : i32
    %c0_i32_0 = arith.constant 0 : i32
    %c0_i32_1 = arith.constant 0 : i32
    return %c0_i32, %c0_i32_0 : i32, i32
  }
  func.func @transform_5(%arg0: i32) -> (i32, i32) {
    %c0_i32 = arith.constant 0 : i32
    %c0_i32_0 = arith.constant 0 : i32
    %c0_i32_1 = arith.constant 0 : i32
    return %c0_i32, %c0_i32_0 : i32, i32
  }
  func.func @transform_6(%arg0: i32) -> (i32, i32) {
    %c0_i32 = arith.constant 0 : i32
    %c0_i32_0 = arith.constant 0 : i32
    %c0_i32_1 = arith.constant 0 : i32
    return %c0_i32, %c0_i32_0 : i32, i32
  }
  func.func @transform_7(%arg0: i32) -> (i32, i32) {
    %c0_i32 = arith.constant 0 : i32
    %c0_i32_0 = arith.constant 0 : i32
    %c0_i32_1 = arith.constant 0 : i32
    return %c0_i32, %c0_i32_0 : i32, i32
  }
  func.func @transform_8(%arg0: i32) -> (i32, i32, i32) {
    %c0_i32 = arith.constant 0 : i32
    %c0_i32_0 = arith.constant 0 : i32
    %c0_i32_1 = arith.constant 0 : i32
    return %arg0, %c0_i32, %c0_i32_0 : i32, i32, i32
  }
}

</mosaic_0001>

<llo_original>
// kernel: tpu_custom_call.1
$region0: #{tpu_custom_call.1}
  #allocation0 [shape = 'u32[]', space=smem, size = 0x4, offset = 0x4, fixed_abs, tag = 'smem constant byte address 0x4 - core index']
  #allocation1 [shape = 'u32[72,128]{1,0:T(1,128)}', space=vmem, size = 0x9000, scoped, tag = 'internal scratch']
  %s0 = inlined_call_operand.vmem [shape: f32[8,16,8], index: 0, kind: input, shape index: {}]
  %s1 = inlined_call_operand.vmem [shape: f32[8,16], index: 1, kind: input, shape index: {}]
  %s2 = inlined_call_operand.vmem [shape: f32[16,8], index: 2, kind: input, shape index: {}]
  %s3 = inlined_call_operand.vmem [shape: f32[8,32], index: 3, kind: input, shape index: {}]
  %s4 = inlined_call_operand.vmem [shape: f32[8,32], index: 4, kind: input, shape index: {}]
  %s5 = inlined_call_operand.vmem [shape: f32[1,32], index: 5, kind: input, shape index: {}]
  %s6 = inlined_call_operand.vmem [shape: f32[32,8], index: 6, kind: input, shape index: {}]
  %s7 = inlined_call_operand.vmem [shape: f32[1,8], index: 7, kind: input, shape index: {}]
  %s8 = inlined_call_operand.vmem [shape: f32[8,16,8], index: 8, kind: output, shape index: {}]
  %s9 = sld [smem:[#allocation0]]
  $region65: #{tpu_custom_call.1} parent=0
    _
  %s11 = ssub.s32 1, %s9
  %s12 = scalar_select 0, %s11, %s9
  loop: start=0, step=1, limit=6
  $region2: #{tpu_custom_call.1} parent=0 // loop_pre_header
    _
  $region3: #{tpu_custom_call.1} parent=0 // loop_header
    %s14 = sphi 0, %s18
    %p15 = scmp.ge.s32.totalorder %s14, 6
    %s24 = sphi 0, %s26
    %s27 = sphi 0, %s24
    %s28 = sphi 0, %s27
    %s44 = sphi 0, %s28
    %s48 = sphi 0, %s48
    %s50 = sphi 0, %s48
    %s51 = sphi 0, %s50
    %s65 = sphi 0, %s51
    %s69 = sphi 0, %s69
    %s71 = sphi 0, %s69
    %s72 = sphi 0, %s71
    %s86 = sphi 0, %s72
    %s90 = sphi 0, %s90
    %s92 = sphi 0, %s90
    %s93 = sphi 0, %s92
    %s107 = sphi 0, %s93
    %s111 = sphi 0, %s111
    %s113 = sphi 0, %s111
    %s114 = sphi 0, %s113
    %s128 = sphi 0, %s114
    %s132 = sphi 0, %s132
    %s134 = sphi 0, %s132
    %s135 = sphi 0, %s134
    %s149 = sphi 0, %s135
    %s153 = sphi 0, %s153
    %s155 = sphi 0, %s153
    %s156 = sphi 0, %s155
    %s170 = sphi 0, %s156
    %s174 = sphi 0, %s174
    %s176 = sphi 0, %s174
    %s177 = sphi 0, %s176
    %s191 = sphi 0, %s177
    %s197 = sphi 0, %s199
    %s200 = sphi 0, %s197
    %s201 = sphi 0, %s200
    %s217 = sphi 0, %s201
  $region4: #{tpu_custom_call.1} parent=0 // loop_header_branch
    %17 = sbr.rel (%p15) target = $region8
  $region5: #{tpu_custom_call.1} parent=0 // loop_body
    %s19 = ssub.s32 %s14, 1
    %s20 = ssub.s32 %s14, 2
    %s21 = sadd.s32 %s14, 1
    %s22 = ssub.s32 %s14, %s21
    %p23 = scmp.eq.s32.totalorder %s22, 0
    %s25 = sadd.s32 %s24, 1
    %s26 = scalar_select %p23, %s24, %s25
    %p29 = pneg %p23
    %p30 = scmp.eq.s32.totalorder %s14, 3
    %p31 = por %p29, %p30
    %p32 = scmp.ne.s32.totalorder %s24, %s27
    %p33 = scmp.eq.s32.totalorder %s14, 0
    %p34 = por %p32, %p33
    %p35 = scmp.ne.s32.totalorder %s24, %s27
    %p36 = scmp.eq.s32.totalorder %s19, 3
    %p37 = por %p35, %p36
    %p38 = scmp.ne.s32.totalorder %s27, %s28
    %p39 = scmp.eq.s32.totalorder %s19, 0
    %p40 = por %p38, %p39
    %p41 = scmp.ne.s32.totalorder %s27, %s28
    %p42 = scmp.eq.s32.totalorder %s20, 3
    %p43 = por %p41, %p42
    %p45 = scmp.ne.s32.totalorder %s28, %s44
    %p46 = scmp.eq.s32.totalorder %s20, 0
    %p47 = por %p45, %p46
    %s49 = sadd.s32 %s48, 1
    %p52 = scmp.eq.s32.totalorder %s14, 3
    %p53 = scmp.ne.s32.totalorder %s48, %s50
    %p54 = scmp.eq.s32.totalorder %s14, 0
    %p55 = por %p53, %p54
    %p56 = scmp.ne.s32.totalorder %s48, %s50
    %p57 = scmp.eq.s32.totalorder %s19, 3
    %p58 = por %p56, %p57
    %p59 = scmp.ne.s32.totalorder %s50, %s51
    %p60 = scmp.eq.s32.totalorder %s19, 0
    %p61 = por %p59, %p60
    %p62 = scmp.ne.s32.totalorder %s50, %s51
    %p63 = scmp.eq.s32.totalorder %s20, 3
    %p64 = por %p62, %p63
    %p66 = scmp.ne.s32.totalorder %s51, %s65
    %p67 = scmp.eq.s32.totalorder %s20, 0
    %p68 = por %p66, %p67
    %s70 = sadd.s32 %s69, 1
    %p73 = scmp.eq.s32.totalorder %s14, 3
    %p74 = scmp.ne.s32.totalorder %s69, %s71
    %p75 = scmp.eq.s32.totalorder %s14, 0
    %p76 = por %p74, %p75
    %p77 = scmp.ne.s32.totalorder %s69, %s71
    %p78 = scmp.eq.s32.totalorder %s19, 3
    %p79 = por %p77, %p78
    %p80 = scmp.ne.s32.totalorder %s71, %s72
    %p81 = scmp.eq.s32.totalorder %s19, 0
    %p82 = por %p80, %p81
    %p83 = scmp.ne.s32.totalorder %s71, %s72
    %p84 = scmp.eq.s32.totalorder %s20, 3
    %p85 = por %p83, %p84
    %p87 = scmp.ne.s32.totalorder %s72, %s86
    %p88 = scmp.eq.s32.totalorder %s20, 0
    %p89 = por %p87, %p88
    %s91 = sadd.s32 %s90, 1
    %p94 = scmp.eq.s32.totalorder %s14, 3
    %p95 = scmp.ne.s32.totalorder %s90, %s92
    %p96 = scmp.eq.s32.totalorder %s14, 0
    %p97 = por %p95, %p96
    %p98 = scmp.ne.s32.totalorder %s90, %s92
    %p99 = scmp.eq.s32.totalorder %s19, 3
    %p100 = por %p98, %p99
    %p101 = scmp.ne.s32.totalorder %s92, %s93
    %p102 = scmp.eq.s32.totalorder %s19, 0
    %p103 = por %p101, %p102
    %p104 = scmp.ne.s32.totalorder %s92, %s93
    %p105 = scmp.eq.s32.totalorder %s20, 3
    %p106 = por %p104, %p105
    %p108 = scmp.ne.s32.totalorder %s93, %s107
    %p109 = scmp.eq.s32.totalorder %s20, 0
    %p110 = por %p108, %p109
    %s112 = sadd.s32 %s111, 1
    %p115 = scmp.eq.s32.totalorder %s14, 3
    %p116 = scmp.ne.s32.totalorder %s111, %s113
    %p117 = scmp.eq.s32.totalorder %s14, 0
    %p118 = por %p116, %p117
    %p119 = scmp.ne.s32.totalorder %s111, %s113
    %p120 = scmp.eq.s32.totalorder %s19, 3
    %p121 = por %p119, %p120
    %p122 = scmp.ne.s32.totalorder %s113, %s114
    %p123 = scmp.eq.s32.totalorder %s19, 0
    %p124 = por %p122, %p123
    %p125 = scmp.ne.s32.totalorder %s113, %s114
    %p126 = scmp.eq.s32.totalorder %s20, 3
    %p127 = por %p125, %p126
    %p129 = scmp.ne.s32.totalorder %s114, %s128
    %p130 = scmp.eq.s32.totalorder %s20, 0
    %p131 = por %p129, %p130
    %s133 = sadd.s32 %s132, 1
    %p136 = scmp.eq.s32.totalorder %s14, 3
    %p137 = scmp.ne.s32.totalorder %s132, %s134
    %p138 = scmp.eq.s32.totalorder %s14, 0
    %p139 = por %p137, %p138
    %p140 = scmp.ne.s32.totalorder %s132, %s134
    %p141 = scmp.eq.s32.totalorder %s19, 3
    %p142 = por %p140, %p141
    %p143 = scmp.ne.s32.totalorder %s134, %s135
    %p144 = scmp.eq.s32.totalorder %s19, 0
    %p145 = por %p143, %p144
    %p146 = scmp.ne.s32.totalorder %s134, %s135
    %p147 = scmp.eq.s32.totalorder %s20, 3
    %p148 = por %p146, %p147
    %p150 = scmp.ne.s32.totalorder %s135, %s149
    %p151 = scmp.eq.s32.totalorder %s20, 0
    %p152 = por %p150, %p151
    %s154 = sadd.s32 %s153, 1
    %p157 = scmp.eq.s32.totalorder %s14, 3
    %p158 = scmp.ne.s32.totalorder %s153, %s155
    %p159 = scmp.eq.s32.totalorder %s14, 0
    %p160 = por %p158, %p159
    %p161 = scmp.ne.s32.totalorder %s153, %s155
    %p162 = scmp.eq.s32.totalorder %s19, 3
    %p163 = por %p161, %p162
    %p164 = scmp.ne.s32.totalorder %s155, %s156
    %p165 = scmp.eq.s32.totalorder %s19, 0
    %p166 = por %p164, %p165
    %p167 = scmp.ne.s32.totalorder %s155, %s156
    %p168 = scmp.eq.s32.totalorder %s20, 3
    %p169 = por %p167, %p168
    %p171 = scmp.ne.s32.totalorder %s156, %s170
    %p172 = scmp.eq.s32.totalorder %s20, 0
    %p173 = por %p171, %p172
    %s175 = sadd.s32 %s174, 1
    %p178 = scmp.eq.s32.totalorder %s14, 3
    %p179 = scmp.ne.s32.totalorder %s174, %s176
    %p180 = scmp.eq.s32.totalorder %s14, 0
    %p181 = por %p179, %p180
    %p182 = scmp.ne.s32.totalorder %s174, %s176
    %p183 = scmp.eq.s32.totalorder %s19, 3
    %p184 = por %p182, %p183
    %p185 = scmp.ne.s32.totalorder %s176, %s177
    %p186 = scmp.eq.s32.totalorder %s19, 0
    %p187 = por %p185, %p186
    %p188 = scmp.ne.s32.totalorder %s176, %s177
    %p189 = scmp.eq.s32.totalorder %s20, 3
    %p190 = por %p188, %p189
    %p192 = scmp.ne.s32.totalorder %s177, %s191
    %p193 = scmp.eq.s32.totalorder %s20, 0
    %p194 = por %p192, %p193
    %s195 = ssub.s32 %s14, %s21
    %p196 = scmp.eq.s32.totalorder %s195, 0
    %s198 = sadd.s32 %s197, 1
    %s199 = scalar_select %p196, %s197, %s198
    %p202 = pneg %p196
    %p203 = scmp.eq.s32.totalorder %s14, 3
    %p204 = por %p202, %p203
    %p205 = scmp.ne.s32.totalorder %s197, %s200
    %p206 = scmp.eq.s32.totalorder %s14, 0
    %p207 = por %p205, %p206
    %p208 = scmp.ne.s32.totalorder %s197, %s200
    %p209 = scmp.eq.s32.totalorder %s19, 3
    %p210 = por %p208, %p209
    %p211 = scmp.ne.s32.totalorder %s200, %s201
    %p212 = scmp.eq.s32.totalorder %s19, 0
    %p213 = por %p211, %p212
    %p214 = scmp.ne.s32.totalorder %s200, %s201
    %p215 = scmp.eq.s32.totalorder %s20, 3
    %p216 = por %p214, %p215
    %p218 = scmp.ne.s32.totalorder %s201, %s217
    %p219 = scmp.eq.s32.totalorder %s20, 0
    %p220 = por %p218, %p219
    %p221 = scmp.le.s32.totalorder 1, %s14
    %p222 = scmp.lt.s32.totalorder %s14, 5
    %p223 = pnand %p221, %p222
    %p224 = pneg %p223
    // Predicated region
    $region9: #{tpu_custom_call.1} parent=5 // pred_check
      _
    $region10: #{tpu_custom_call.1} parent=5 // pred_check_branch
      %226 = sbr.rel (%p223) target = $region12
    $region11: #{tpu_custom_call.1} parent=5 // pred_region
      %s227 = ssub.s32 %s14, 1
      // Predicated region
      $region13: #{tpu_custom_call.1} parent=11 // pred_check
        %p228 = pneg %p61
      $region14: #{tpu_custom_call.1} parent=11 // pred_check_branch
        %230 = sbr.rel (%p228) target = $region16
      $region15: #{tpu_custom_call.1} parent=11 // pred_region
        _
      $region16: #{tpu_custom_call.1} parent=11 // pred_fallthru
        _
      // Predicated region
      $region17: #{tpu_custom_call.1} parent=11 // pred_check
        %p231 = pneg %p82
      $region18: #{tpu_custom_call.1} parent=11 // pred_check_branch
        %233 = sbr.rel (%p231) target = $region20
      $region19: #{tpu_custom_call.1} parent=11 // pred_region
        _
      $region20: #{tpu_custom_call.1} parent=11 // pred_fallthru
        _
      // Predicated region
      $region21: #{tpu_custom_call.1} parent=11 // pred_check
        %p234 = pneg %p103
      $region22: #{tpu_custom_call.1} parent=11 // pred_check_branch
        %236 = sbr.rel (%p234) target = $region24
      $region23: #{tpu_custom_call.1} parent=11 // pred_region
        _
      $region24: #{tpu_custom_call.1} parent=11 // pred_fallthru
        _
      // Predicated region
      $region25: #{tpu_custom_call.1} parent=11 // pred_check
        %p237 = pneg %p124
      $region26: #{tpu_custom_call.1} parent=11 // pred_check_branch
        %239 = sbr.rel (%p237) target = $region28
      $region27: #{tpu_custom_call.1} parent=11 // pred_region
        _
      $region28: #{tpu_custom_call.1} parent=11 // pred_fallthru
        _
      // Predicated region
      $region29: #{tpu_custom_call.1} parent=11 // pred_check
        %p240 = pneg %p145
      $region30: #{tpu_custom_call.1} parent=11 // pred_check_branch
        %242 = sbr.rel (%p240) target = $region32
      $region31: #{tpu_custom_call.1} parent=11 // pred_region
        _
      $region32: #{tpu_custom_call.1} parent=11 // pred_fallthru
        _
      // Predicated region
      $region33: #{tpu_custom_call.1} parent=11 // pred_check
        %p243 = pneg %p166
      $region34: #{tpu_custom_call.1} parent=11 // pred_check_branch
        %245 = sbr.rel (%p243) target = $region36
      $region35: #{tpu_custom_call.1} parent=11 // pred_region
        _
      $region36: #{tpu_custom_call.1} parent=11 // pred_fallthru
        _
      // Predicated region
      $region37: #{tpu_custom_call.1} parent=11 // pred_check
        %p246 = pneg %p187
      $region38: #{tpu_custom_call.1} parent=11 // pred_check_branch
        %248 = sbr.rel (%p246) target = $region40
      $region39: #{tpu_custom_call.1} parent=11 // pred_region
        _
      $region40: #{tpu_custom_call.1} parent=11 // pred_fallthru
        _
    $region12: #{tpu_custom_call.1} parent=5 // pred_fallthru
      _
    %p249 = scmp.lt.s32.totalorder %s14, 4
    // Predicated region
    $region41: #{tpu_custom_call.1} parent=5 // pred_check
      %p250 = pneg %p249
    $region42: #{tpu_custom_call.1} parent=5 // pred_check_branch
      %252 = sbr.rel (%p250) target = $region44
    $region43: #{tpu_custom_call.1} parent=5 // pred_region
      // Predicated region
      $region45: #{tpu_custom_call.1} parent=43 // pred_check
        %p253 = pneg %p34
      $region46: #{tpu_custom_call.1} parent=43 // pred_check_branch
        %255 = sbr.rel (%p253) target = $region48
      $region47: #{tpu_custom_call.1} parent=43 // pred_region
        %s256 = smul.u32 2, %s14
        %p257 = scmp.lt.s32.totalorder %s256, 7
        %s258 = scalar_select %p257, %s256, 7
        %s259 = smul.addr %s258, 2
        %s260 = smul.addr %s259, 8
        %s261 = scalar_lea.vmem %s0, %s260
        %s262 = smul.u32 2, %s14
      $region48: #{tpu_custom_call.1} parent=43 // pred_fallthru
        _
    $region44: #{tpu_custom_call.1} parent=5 // pred_fallthru
      _
    %p263 = scmp.le.s32.totalorder 1, %s14
    %p264 = scmp.lt.s32.totalorder %s14, 5
    %p265 = pnand %p263, %p264
    %p266 = pneg %p265
    // Predicated region
    $region49: #{tpu_custom_call.1} parent=5 // pred_check
      _
    $region50: #{tpu_custom_call.1} parent=5 // pred_check_branch
      %268 = sbr.rel (%p265) target = $region52
    $region51: #{tpu_custom_call.1} parent=5 // pred_region
      %s269 = ssub.s32 %s14, 1
      %s270 = smul.u32 2, %s19
      %p271 = scmp.lt.s32.totalorder %s270, 7
      %s272 = scalar_select %p271, %s270, 7
      %s273 = smul.addr %s272, 2
      %s274 = smul.addr %s273, 8
      %s275 = scalar_lea.vmem %s0, %s274
      %p276 = pneg %p40
      %p277 = pneg %p37
      %p278 = pneg %p61
      %p279 = pneg %p58
      %p280 = pneg %p82
      %p281 = pneg %p79
      %p282 = pneg %p103
      %p283 = pneg %p100
      %p284 = pneg %p124
      %p285 = pneg %p121
      %p286 = pneg %p145
      %p287 = pneg %p142
      %p288 = pneg %p166
      %p289 = pneg %p163
      %p290 = pneg %p187
      %p291 = pneg %p184
      %p292 = pneg %p213
      %p293 = pneg %p210
      %s294 = smul.u32 2, %s19
      %p295 = scmp.lt.s32.totalorder %s294, 7
      %s296 = scalar_select %p295, %s294, 7
      %s297 = smul.addr %s296, 2
      %s298 = smul.addr %s297, 8
      %s299 = scalar_lea.vmem %s8, %s298
      %s300 = smul.u32 2, %s19
      %p301 = scmp.lt.s32.totalorder %s300, 7
      %s302 = scalar_select %p301, %s300, 7
      %s303 = smul.addr %s302, 2
      %s304 = smul.addr %s303, 8
      %s305 = scalar_lea.vmem %s0, %s304
      %s306 = smul.u32 2, %s19
      %s307 = smul.u32 2, %s19
      %p308 = scmp.lt.s32.totalorder %s307, 7
      %s309 = scalar_select %p308, %s307, 7
      %s310 = smul.addr %s309, 2
      %s311 = smul.addr %s310, 8
      %s312 = scalar_lea.vmem %s8, %s311
      %s313 = smul.u32 2, %s19
      %v314 = vld [vmem:[%s1] sm:$0xff]
      %v315 = vld [vmem:[%s2] sm:$0xff]
      %v316 = vld [vmem:[%s2 + $0x8] sm:$0xff]
      %v317 = vld [vmem:[%s3] sm:$0xff]
      %v318 = vld [vmem:[%s4] sm:$0xff]
      %v319 = vld [vmem:[%s6] sm:$0xff]
      %v320 = vld [vmem:[%s6 + $0x8] sm:$0xff]
      %v321 = vld [vmem:[%s6 + $0x10] sm:$0xff]
      %v322 = vld [vmem:[%s6 + $0x18] sm:$0xff]
      %v323 = vld [vmem:[%s5] sm:$0x1]
      %v325 = vperm.slane %v323, 0
      %v327 = vld [vmem:[%s7] sm:$0x1]
      %v329 = vperm.slane %v327, 0
      %v331 = vld [vmem:[%s305] sm:$0xff]
      %v332 = vld [vmem:[%s305 + $0x8] sm:$0xff]
      %vm333 = vcmask 130048
      %v335 = vsel %vm333, %v314, 0
      %337 = vmatpush.msra.mxu0 0.0
      %338 = vmatpush.msra.mxu0 0.0
      %339 = vmatpush.msra.mxu0 0.0
      %340 = vmatpush.msra.mxu0 0.0
      %341 = vmatpush.msra.mxu0 0.0
      %342 = vmatpush.msra.mxu0 0.0
      %343 = vmatpush.msra.mxu0 0.0
      %344 = vmatpush.msra.mxu0 0.0
      %345 = vmatpush.msra.mxu0 0.0
      %346 = vmatpush.msra.mxu0 0.0
      %347 = vmatpush.msra.mxu0 0.0
      %348 = vmatpush.msra.mxu0 0.0
      %349 = vmatpush.msra.mxu0 0.0
      %350 = vmatpush.msra.mxu0 0.0
      %351 = vmatpush.msra.mxu0 %v332
      %352 = vmatpush.msra.mxu0 %v331
      %353 = vmatmul.f32.gmra.mxu0 %v335
      %v354 = vpop.f32.mrf.mxu0
      %v355 = vadd.f32 0.0, %v354
      %356 = vdwg.mxu0
      %vm357 = vcmask 64512
      %v359 = vsel %vm357, %v355, 0
      %361 = vmatpush.msra.mxu0 0.0
      %362 = vmatpush.msra.mxu0 0.0
      %363 = vmatpush.msra.mxu0 0.0
      %364 = vmatpush.msra.mxu0 0.0
      %365 = vmatpush.msra.mxu0 0.0
      %366 = vmatpush.msra.mxu0 0.0
      %367 = vmatpush.msra.mxu0 0.0
      %368 = vmatpush.msra.mxu0 0.0
      %369 = vmatpush.msra.mxu0 0.0
      %370 = vmatpush.msra.mxu0 0.0
      %371 = vmatpush.msra.mxu0 0.0
      %372 = vmatpush.msra.mxu0 0.0
      %373 = vmatpush.msra.mxu0 0.0
      %374 = vmatpush.msra.mxu0 0.0
      %375 = vmatpush.msra.mxu0 0.0
      %376 = vmatpush.msra.mxu0 %v318
      %377 = vmatmul.f32.gmra.mxu0 %v359
      %v378 = vpop.f32.mrf.mxu0
      %v379 = vadd.f32 0.0, %v378
      %380 = vdwg.mxu0
      %v382 = vsel %vm357, %v315, 0
      %v385 = vsel %vm357, %v316, 0
      %387 = vmatpush.msra.mxu0 0.0
      %388 = vmatpush.msra.mxu0 0.0
      %389 = vmatpush.msra.mxu0 0.0
      %390 = vmatpush.msra.mxu0 0.0
      %391 = vmatpush.msra.mxu0 0.0
      %392 = vmatpush.msra.mxu0 0.0
      %393 = vmatpush.msra.mxu0 0.0
      %394 = vmatpush.msra.mxu0 0.0
      %395 = vmatpush.msra.mxu0 0.0
      %396 = vmatpush.msra.mxu0 0.0
      %397 = vmatpush.msra.mxu0 0.0
      %398 = vmatpush.msra.mxu0 0.0
      %399 = vmatpush.msra.mxu0 0.0
      %400 = vmatpush.msra.mxu0 0.0
      %401 = vmatpush.msra.mxu0 0.0
      %402 = vmatpush.msra.mxu0 %v379
      %403 = vmatmul.f32.gmra.mxu0 %v382
      %v404 = vpop.f32.mrf.mxu0
      %v405 = vadd.f32 0.0, %v404
      %406 = vmatmul.f32.gmra.mxu0 %v385
      %v407 = vpop.f32.mrf.mxu0
      %v408 = vadd.f32 0.0, %v407
      %409 = vdwg.mxu0
      %v411 = vsel %vm357, %v331, 0
      %v414 = vsel %vm357, %v332, 0
      %416 = vmatpush.msra.mxu0 0.0
      %417 = vmatpush.msra.mxu0 0.0
      %418 = vmatpush.msra.mxu0 0.0
      %419 = vmatpush.msra.mxu0 0.0
      %420 = vmatpush.msra.mxu0 0.0
      %421 = vmatpush.msra.mxu0 0.0
      %422 = vmatpush.msra.mxu0 0.0
      %423 = vmatpush.msra.mxu0 0.0
      %424 = vmatpush.msra.mxu0 0.0
      %425 = vmatpush.msra.mxu0 0.0
      %426 = vmatpush.msra.mxu0 0.0
      %427 = vmatpush.msra.mxu0 0.0
      %428 = vmatpush.msra.mxu0 0.0
      %429 = vmatpush.msra.mxu0 0.0
      %430 = vmatpush.msra.mxu0 0.0
      %431 = vmatpush.msra.mxu0 %v317
      %432 = vmatmul.f32.gmra.mxu0 %v411
      %v433 = vpop.f32.mrf.mxu0
      %v434 = vadd.f32 %v405, %v433
      %435 = vmatmul.f32.gmra.mxu0 %v414
      %v436 = vpop.f32.mrf.mxu0
      %v437 = vadd.f32 %v408, %v436
      %438 = vdwg.mxu0
      %v439 = vadd.f32 %v434, %v325
      %v440 = vadd.f32 %v437, %v325
      %v441 = vmax.f32 %v439, 0.0
      %v442 = vmax.f32 %v440, 0.0
      %vm443 = vcmask 261120
      %v445 = vsel %vm443, %v441, 0
      %v448 = vsel %vm443, %v442, 0
      %450 = vmatpush.msra.mxu0 0.0
      %451 = vmatpush.msra.mxu0 0.0
      %452 = vmatpush.msra.mxu0 0.0
      %453 = vmatpush.msra.mxu0 0.0
      %454 = vmatpush.msra.mxu0 0.0
      %455 = vmatpush.msra.mxu0 0.0
      %456 = vmatpush.msra.mxu0 0.0
      %457 = vmatpush.msra.mxu0 0.0
      %458 = vmatpush.msra.mxu0 0.0
      %459 = vmatpush.msra.mxu0 0.0
      %460 = vmatpush.msra.mxu0 0.0
      %461 = vmatpush.msra.mxu0 0.0
      %462 = vmatpush.msra.mxu0 %v322
      %463 = vmatpush.msra.mxu0 %v321
      %464 = vmatpush.msra.mxu0 %v320
      %465 = vmatpush.msra.mxu0 %v319
      %466 = vmatmul.f32.gmra.mxu0 %v445
      %v467 = vpop.f32.mrf.mxu0
      %v468 = vadd.f32 %v329, %v467
      %469 = vmatmul.f32.gmra.mxu0 %v448
      %v470 = vpop.f32.mrf.mxu0
      %v471 = vadd.f32 %v329, %v470
      %472 = vdwg.mxu0
      %473 = vst.msk [vmem:[%s312] sm:$0xff] %vm357, %v468
      %474 = vst.msk [vmem:[%s312 + $0x8] sm:$0xff] %vm357, %v471
      %s475 = scalar_lea.vmem %s305, 16
      %v476 = vld [vmem:[%s475] sm:$0xff]
      %v477 = vld [vmem:[%s475 + $0x8] sm:$0xff]
      %478 = vmatpush.msra.mxu0 0.0
      %479 = vmatpush.msra.mxu0 0.0
      %480 = vmatpush.msra.mxu0 0.0
      %481 = vmatpush.msra.mxu0 0.0
      %482 = vmatpush.msra.mxu0 0.0
      %483 = vmatpush.msra.mxu0 0.0
      %484 = vmatpush.msra.mxu0 0.0
      %485 = vmatpush.msra.mxu0 0.0
      %486 = vmatpush.msra.mxu0 0.0
      %487 = vmatpush.msra.mxu0 0.0
      %488 = vmatpush.msra.mxu0 0.0
      %489 = vmatpush.msra.mxu0 0.0
      %490 = vmatpush.msra.mxu0 0.0
      %491 = vmatpush.msra.mxu0 0.0
      %492 = vmatpush.msra.mxu0 %v477
      %493 = vmatpush.msra.mxu0 %v476
      %494 = vmatmul.f32.gmra.mxu0 %v335
      %v495 = vpop.f32.mrf.mxu0
      %v496 = vadd.f32 0.0, %v495
      %497 = vdwg.mxu0
      %v499 = vsel %vm357, %v496, 0
      %501 = vmatpush.msra.mxu0 0.0
      %502 = vmatpush.msra.mxu0 0.0
      %503 = vmatpush.msra.mxu0 0.0
      %504 = vmatpush.msra.mxu0 0.0
      %505 = vmatpush.msra.mxu0 0.0
      %506 = vmatpush.msra.mxu0 0.0
      %507 = vmatpush.msra.mxu0 0.0
      %508 = vmatpush.msra.mxu0 0.0
      %509 = vmatpush.msra.mxu0 0.0
      %510 = vmatpush.msra.mxu0 0.0
      %511 = vmatpush.msra.mxu0 0.0
      %512 = vmatpush.msra.mxu0 0.0
      %513 = vmatpush.msra.mxu0 0.0
      %514 = vmatpush.msra.mxu0 0.0
      %515 = vmatpush.msra.mxu0 0.0
      %516 = vmatpush.msra.mxu0 %v318
      %517 = vmatmul.f32.gmra.mxu0 %v499
      %v518 = vpop.f32.mrf.mxu0
      %v519 = vadd.f32 0.0, %v518
      %520 = vdwg.mxu0
      %521 = vmatpush.msra.mxu0 0.0
      %522 = vmatpush.msra.mxu0 0.0
      %523 = vmatpush.msra.mxu0 0.0
      %524 = vmatpush.msra.mxu0 0.0
      %525 = vmatpush.msra.mxu0 0.0
      %526 = vmatpush.msra.mxu0 0.0
      %527 = vmatpush.msra.mxu0 0.0
      %528 = vmatpush.msra.mxu0 0.0
      %529 = vmatpush.msra.mxu0 0.0
      %530 = vmatpush.msra.mxu0 0.0
      %531 = vmatpush.msra.mxu0 0.0
      %532 = vmatpush.msra.mxu0 0.0
      %533 = vmatpush.msra.mxu0 0.0
      %534 = vmatpush.msra.mxu0 0.0
      %535 = vmatpush.msra.mxu0 0.0
      %536 = vmatpush.msra.mxu0 %v519
      %537 = vmatmul.f32.gmra.mxu0 %v382
      %v538 = vpop.f32.mrf.mxu0
      %v539 = vadd.f32 0.0, %v538
      %540 = vmatmul.f32.gmra.mxu0 %v385
      %v541 = vpop.f32.mrf.mxu0
      %v542 = vadd.f32 0.0, %v541
      %543 = vdwg.mxu0
      %v545 = vsel %vm357, %v476, 0
      %v548 = vsel %vm357, %v477, 0
      %550 = vmatpush.msra.mxu0 0.0
      %551 = vmatpush.msra.mxu0 0.0
      %552 = vmatpush.msra.mxu0 0.0
      %553 = vmatpush.msra.mxu0 0.0
      %554 = vmatpush.msra.mxu0 0.0
      %555 = vmatpush.msra.mxu0 0.0
      %556 = vmatpush.msra.mxu0 0.0
      %557 = vmatpush.msra.mxu0 0.0
      %558 = vmatpush.msra.mxu0 0.0
      %559 = vmatpush.msra.mxu0 0.0
      %560 = vmatpush.msra.mxu0 0.0
      %561 = vmatpush.msra.mxu0 0.0
      %562 = vmatpush.msra.mxu0 0.0
      %563 = vmatpush.msra.mxu0 0.0
      %564 = vmatpush.msra.mxu0 0.0
      %565 = vmatpush.msra.mxu0 %v317
      %566 = vmatmul.f32.gmra.mxu0 %v545
      %v567 = vpop.f32.mrf.mxu0
      %v568 = vadd.f32 %v539, %v567
      %569 = vmatmul.f32.gmra.mxu0 %v548
      %v570 = vpop.f32.mrf.mxu0
      %v571 = vadd.f32 %v542, %v570
      %572 = vdwg.mxu0
      %v573 = vadd.f32 %v568, %v325
      %v574 = vadd.f32 %v571, %v325
      %v575 = vmax.f32 %v573, 0.0
      %v576 = vmax.f32 %v574, 0.0
      %v578 = vsel %vm443, %v575, 0
      %v581 = vsel %vm443, %v576, 0
      %583 = vmatpush.msra.mxu0 0.0
      %584 = vmatpush.msra.mxu0 0.0
      %585 = vmatpush.msra.mxu0 0.0
      %586 = vmatpush.msra.mxu0 0.0
      %587 = vmatpush.msra.mxu0 0.0
      %588 = vmatpush.msra.mxu0 0.0
      %589 = vmatpush.msra.mxu0 0.0
      %590 = vmatpush.msra.mxu0 0.0
      %591 = vmatpush.msra.mxu0 0.0
      %592 = vmatpush.msra.mxu0 0.0
      %593 = vmatpush.msra.mxu0 0.0
      %594 = vmatpush.msra.mxu0 0.0
      %595 = vmatpush.msra.mxu0 %v322
      %596 = vmatpush.msra.mxu0 %v321
      %597 = vmatpush.msra.mxu0 %v320
      %598 = vmatpush.msra.mxu0 %v319
      %599 = vmatmul.f32.gmra.mxu0 %v578
      %v600 = vpop.f32.mrf.mxu0
      %v601 = vadd.f32 %v329, %v600
      %602 = vmatmul.f32.gmra.mxu0 %v581
      %v603 = vpop.f32.mrf.mxu0
      %v604 = vadd.f32 %v329, %v603
      %605 = vdwg.mxu0
      %s606 = scalar_lea.vmem %s312, 16
      %607 = vst.msk [vmem:[%s606] sm:$0xff] %vm357, %v601
      %608 = vst.msk [vmem:[%s606 + $0x8] sm:$0xff] %vm357, %v604
      %s609 = smul.u32 2, %s19
      %p610 = scmp.lt.s32.totalorder %s609, 7
      %s611 = scalar_select %p610, %s609, 7
      %s612 = smul.addr %s611, 2
      %s613 = smul.addr %s612, 8
      %s614 = scalar_lea.vmem %s8, %s613
      // Predicated region
      $region53: #{tpu_custom_call.1} parent=51 // pred_check
        %p615 = pneg %p210
      $region54: #{tpu_custom_call.1} parent=51 // pred_check_branch
        %617 = sbr.rel (%p615) target = $region56
      $region55: #{tpu_custom_call.1} parent=51 // pred_region
        %s618 = smul.u32 2, %s19
      $region56: #{tpu_custom_call.1} parent=51 // pred_fallthru
        _
    $region52: #{tpu_custom_call.1} parent=5 // pred_fallthru
      _
    %p619 = scmp.le.s32.totalorder 2, %s14
    // Predicated region
    $region57: #{tpu_custom_call.1} parent=5 // pred_check
      %p620 = pneg %p619
    $region58: #{tpu_custom_call.1} parent=5 // pred_check_branch
      %622 = sbr.rel (%p620) target = $region60
    $region59: #{tpu_custom_call.1} parent=5 // pred_region
      %s623 = ssub.s32 %s14, 2
      // Predicated region
      $region61: #{tpu_custom_call.1} parent=59 // pred_check
        %p624 = pneg %p216
      $region62: #{tpu_custom_call.1} parent=59 // pred_check_branch
        %626 = sbr.rel (%p624) target = $region64
      $region63: #{tpu_custom_call.1} parent=59 // pred_region
        %s627 = smul.u32 2, %s20
        %p628 = scmp.lt.s32.totalorder %s627, 7
        %s629 = scalar_select %p628, %s627, 7
        %s630 = smul.addr %s629, 2
        %s631 = smul.addr %s630, 8
        %s632 = scalar_lea.vmem %s8, %s631
      $region64: #{tpu_custom_call.1} parent=59 // pred_fallthru
        _
    $region60: #{tpu_custom_call.1} parent=5 // pred_fallthru
      _
  $region6: #{tpu_custom_call.1} parent=0 // loop_footer
    %s18 = sadd.s32 1, %s14
  $region7: #{tpu_custom_call.1} parent=0 // loop_footer_branch
    %13 = sbr.rel target = $region3
  $region8: #{tpu_custom_call.1} parent=0 // loop_exit
    _

// kernel: tpu_custom_call.1
$region0: #{tpu_custom_call.1}
  #allocation0 [shape = 'u32[]', space=smem, size = 0x4, offset = 0x4, fixed_abs, tag = 'smem constant byte address 0x4 - core index']
  #allocation1 [shape = 'u32[72,128]{1,0:T(1,128)}', space=vmem, size = 0x9000, scoped, tag = 'internal scratch']
  %s0 = inlined_call_operand.vmem [shape: f32[8,16,8], index: 0, kind: input, shape index: {}]
  %s1 = inlined_call_operand.vmem [shape: f32[8,16], index: 1, kind: input, shape index: {}]
  %s2 = inlined_call_operand.vmem [shape: f32[16,8], index: 2, kind: input, shape index: {}]
  %s3 = inlined_call_operand.vmem [shape: f32[8,32], index: 3, kind: input, shape index: {}]
  %s4 = inlined_call_operand.vmem [shape: f32[8,32], index: 4, kind: input, shape index: {}]
  %s5 = inlined_call_operand.vmem [shape: f32[1,32], index: 5, kind: input, shape index: {}]
  %s6 = inlined_call_operand.vmem [shape: f32[32,8], index: 6, kind: input, shape index: {}]
  %s7 = inlined_call_operand.vmem [shape: f32[1,8], index: 7, kind: input, shape index: {}]
  %s8 = inlined_call_operand.vmem [shape: f32[8,16,8], index: 8, kind: output, shape index: {}]
  %s9 = sld [smem:[#allocation0]]
  $region65: #{tpu_custom_call.1} parent=0
    _
  %s11 = ssub.s32 1, %s9
  %s12 = scalar_select 0, %s11, %s9
  loop: start=0, step=1, limit=6
  $region2: #{tpu_custom_call.1} parent=0 // loop_pre_header
    _
  $region3: #{tpu_custom_call.1} parent=0 // loop_header
    %s14 = sphi 0, %s18
    %p15 = scmp.ge.s32.totalorder %s14, 6
    %s24 = sphi 0, %s26
    %s27 = sphi 0, %s24
    %s28 = sphi 0, %s27
    %s44 = sphi 0, %s28
    %s48 = sphi 0, %s48
    %s50 = sphi 0, %s48
    %s51 = sphi 0, %s50
    %s65 = sphi 0, %s51
    %s69 = sphi 0, %s69
    %s71 = sphi 0, %s69
    %s72 = sphi 0, %s71
    %s86 = sphi 0, %s72
    %s90 = sphi 0, %s90
    %s92 = sphi 0, %s90
    %s93 = sphi 0, %s92
    %s107 = sphi 0, %s93
    %s111 = sphi 0, %s111
    %s113 = sphi 0, %s111
    %s114 = sphi 0, %s113
    %s128 = sphi 0, %s114
    %s132 = sphi 0, %s132
    %s134 = sphi 0, %s132
    %s135 = sphi 0, %s134
    %s149 = sphi 0, %s135
    %s153 = sphi 0, %s153
    %s155 = sphi 0, %s153
    %s156 = sphi 0, %s155
    %s170 = sphi 0, %s156
    %s174 = sphi 0, %s174
    %s176 = sphi 0, %s174
    %s177 = sphi 0, %s176
    %s191 = sphi 0, %s177
    %s197 = sphi 0, %s199
    %s200 = sphi 0, %s197
    %s201 = sphi 0, %s200
    %s217 = sphi 0, %s201
  $region4: #{tpu_custom_call.1} parent=0 // loop_header_branch
    %17 = sbr.rel (%p15) target = $region8
  $region5: #{tpu_custom_call.1} parent=0 // loop_body
    %s19 = ssub.s32 %s14, 1
    %s20 = ssub.s32 %s14, 2
    %s21 = sadd.s32 %s14, 1
    %s22 = ssub.s32 %s14, %s21
    %p23 = scmp.eq.s32.totalorder %s22, 0
    %s25 = sadd.s32 %s24, 1
    %s26 = scalar_select %p23, %s24, %s25
    %p29 = pneg %p23
    %p30 = scmp.eq.s32.totalorder %s14, 3
    %p31 = por %p29, %p30
    %p32 = scmp.ne.s32.totalorder %s24, %s27
    %p33 = scmp.eq.s32.totalorder %s14, 0
    %p34 = por %p32, %p33
    %p35 = scmp.ne.s32.totalorder %s24, %s27
    %p36 = scmp.eq.s32.totalorder %s19, 3
    %p37 = por %p35, %p36
    %p38 = scmp.ne.s32.totalorder %s27, %s28
    %p39 = scmp.eq.s32.totalorder %s19, 0
    %p40 = por %p38, %p39
    %p41 = scmp.ne.s32.totalorder %s27, %s28
    %p42 = scmp.eq.s32.totalorder %s20, 3
    %p43 = por %p41, %p42
    %p45 = scmp.ne.s32.totalorder %s28, %s44
    %p46 = scmp.eq.s32.totalorder %s20, 0
    %p47 = por %p45, %p46
    %s49 = sadd.s32 %s48, 1
    %p52 = scmp.eq.s32.totalorder %s14, 3
    %p53 = scmp.ne.s32.totalorder %s48, %s50
    %p54 = scmp.eq.s32.totalorder %s14, 0
    %p55 = por %p53, %p54
    %p56 = scmp.ne.s32.totalorder %s48, %s50
    %p57 = scmp.eq.s32.totalorder %s19, 3
    %p58 = por %p56, %p57
    %p59 = scmp.ne.s32.totalorder %s50, %s51
    %p60 = scmp.eq.s32.totalorder %s19, 0
    %p61 = por %p59, %p60
    %p62 = scmp.ne.s32.totalorder %s50, %s51
    %p63 = scmp.eq.s32.totalorder %s20, 3
    %p64 = por %p62, %p63
    %p66 = scmp.ne.s32.totalorder %s51, %s65
    %p67 = scmp.eq.s32.totalorder %s20, 0
    %p68 = por %p66, %p67
    %s70 = sadd.s32 %s69, 1
    %p73 = scmp.eq.s32.totalorder %s14, 3
    %p74 = scmp.ne.s32.totalorder %s69, %s71
    %p75 = scmp.eq.s32.totalorder %s14, 0
    %p76 = por %p74, %p75
    %p77 = scmp.ne.s32.totalorder %s69, %s71
    %p78 = scmp.eq.s32.totalorder %s19, 3
    %p79 = por %p77, %p78
    %p80 = scmp.ne.s32.totalorder %s71, %s72
    %p81 = scmp.eq.s32.totalorder %s19, 0
    %p82 = por %p80, %p81
    %p83 = scmp.ne.s32.totalorder %s71, %s72
    %p84 = scmp.eq.s32.totalorder %s20, 3
    %p85 = por %p83, %p84
    %p87 = scmp.ne.s32.totalorder %s72, %s86
    %p88 = scmp.eq.s32.totalorder %s20, 0
    %p89 = por %p87, %p88
    %s91 = sadd.s32 %s90, 1
    %p94 = scmp.eq.s32.totalorder %s14, 3
    %p95 = scmp.ne.s32.totalorder %s90, %s92
    %p96 = scmp.eq.s32.totalorder %s14, 0
    %p97 = por %p95, %p96
    %p98 = scmp.ne.s32.totalorder %s90, %s92
    %p99 = scmp.eq.s32.totalorder %s19, 3
    %p100 = por %p98, %p99
    %p101 = scmp.ne.s32.totalorder %s92, %s93
    %p102 = scmp.eq.s32.totalorder %s19, 0
    %p103 = por %p101, %p102
    %p104 = scmp.ne.s32.totalorder %s92, %s93
    %p105 = scmp.eq.s32.totalorder %s20, 3
    %p106 = por %p104, %p105
    %p108 = scmp.ne.s32.totalorder %s93, %s107
    %p109 = scmp.eq.s32.totalorder %s20, 0
    %p110 = por %p108, %p109
    %s112 = sadd.s32 %s111, 1
    %p115 = scmp.eq.s32.totalorder %s14, 3
    %p116 = scmp.ne.s32.totalorder %s111, %s113
    %p117 = scmp.eq.s32.totalorder %s14, 0
    %p118 = por %p116, %p117
    %p119 = scmp.ne.s32.totalorder %s111, %s113
    %p120 = scmp.eq.s32.totalorder %s19, 3
    %p121 = por %p119, %p120
    %p122 = scmp.ne.s32.totalorder %s113, %s114
    %p123 = scmp.eq.s32.totalorder %s19, 0
    %p124 = por %p122, %p123
    %p125 = scmp.ne.s32.totalorder %s113, %s114
    %p126 = scmp.eq.s32.totalorder %s20, 3
    %p127 = por %p125, %p126
    %p129 = scmp.ne.s32.totalorder %s114, %s128
    %p130 = scmp.eq.s32.totalorder %s20, 0
    %p131 = por %p129, %p130
    %s133 = sadd.s32 %s132, 1
    %p136 = scmp.eq.s32.totalorder %s14, 3
    %p137 = scmp.ne.s32.totalorder %s132, %s134
    %p138 = scmp.eq.s32.totalorder %s14, 0
    %p139 = por %p137, %p138
    %p140 = scmp.ne.s32.totalorder %s132, %s134
    %p141 = scmp.eq.s32.totalorder %s19, 3
    %p142 = por %p140, %p141
    %p143 = scmp.ne.s32.totalorder %s134, %s135
    %p144 = scmp.eq.s32.totalorder %s19, 0
    %p145 = por %p143, %p144
    %p146 = scmp.ne.s32.totalorder %s134, %s135
    %p147 = scmp.eq.s32.totalorder %s20, 3
    %p148 = por %p146, %p147
    %p150 = scmp.ne.s32.totalorder %s135, %s149
    %p151 = scmp.eq.s32.totalorder %s20, 0
    %p152 = por %p150, %p151
    %s154 = sadd.s32 %s153, 1
    %p157 = scmp.eq.s32.totalorder %s14, 3
    %p158 = scmp.ne.s32.totalorder %s153, %s155
    %p159 = scmp.eq.s32.totalorder %s14, 0
    %p160 = por %p158, %p159
    %p161 = scmp.ne.s32.totalorder %s153, %s155
    %p162 = scmp.eq.s32.totalorder %s19, 3
    %p163 = por %p161, %p162
    %p164 = scmp.ne.s32.totalorder %s155, %s156
    %p165 = scmp.eq.s32.totalorder %s19, 0
    %p166 = por %p164, %p165
    %p167 = scmp.ne.s32.totalorder %s155, %s156
    %p168 = scmp.eq.s32.totalorder %s20, 3
    %p169 = por %p167, %p168
    %p171 = scmp.ne.s32.totalorder %s156, %s170
    %p172 = scmp.eq.s32.totalorder %s20, 0
    %p173 = por %p171, %p172
    %s175 = sadd.s32 %s174, 1
    %p178 = scmp.eq.s32.totalorder %s14, 3
    %p179 = scmp.ne.s32.totalorder %s174, %s176
    %p180 = scmp.eq.s32.totalorder %s14, 0
    %p181 = por %p179, %p180
    %p182 = scmp.ne.s32.totalorder %s174, %s176
    %p183 = scmp.eq.s32.totalorder %s19, 3
    %p184 = por %p182, %p183
    %p185 = scmp.ne.s32.totalorder %s176, %s177
    %p186 = scmp.eq.s32.totalorder %s19, 0
    %p187 = por %p185, %p186
    %p188 = scmp.ne.s32.totalorder %s176, %s177
    %p189 = scmp.eq.s32.totalorder %s20, 3
    %p190 = por %p188, %p189
    %p192 = scmp.ne.s32.totalorder %s177, %s191
    %p193 = scmp.eq.s32.totalorder %s20, 0
    %p194 = por %p192, %p193
    %s195 = ssub.s32 %s14, %s21
    %p196 = scmp.eq.s32.totalorder %s195, 0
    %s198 = sadd.s32 %s197, 1
    %s199 = scalar_select %p196, %s197, %s198
    %p202 = pneg %p196
    %p203 = scmp.eq.s32.totalorder %s14, 3
    %p204 = por %p202, %p203
    %p205 = scmp.ne.s32.totalorder %s197, %s200
    %p206 = scmp.eq.s32.totalorder %s14, 0
    %p207 = por %p205, %p206
    %p208 = scmp.ne.s32.totalorder %s197, %s200
    %p209 = scmp.eq.s32.totalorder %s19, 3
    %p210 = por %p208, %p209
    %p211 = scmp.ne.s32.totalorder %s200, %s201
    %p212 = scmp.eq.s32.totalorder %s19, 0
    %p213 = por %p211, %p212
    %p214 = scmp.ne.s32.totalorder %s200, %s201
    %p215 = scmp.eq.s32.totalorder %s20, 3
    %p216 = por %p214, %p215
    %p218 = scmp.ne.s32.totalorder %s201, %s217
    %p219 = scmp.eq.s32.totalorder %s20, 0
    %p220 = por %p218, %p219
    %p221 = scmp.le.s32.totalorder 1, %s14
    %p222 = scmp.lt.s32.totalorder %s14, 5
    %p223 = pnand %p221, %p222
    %p224 = pneg %p223
    // Predicated region
    $region9: #{tpu_custom_call.1} parent=5 // pred_check
      _
    $region10: #{tpu_custom_call.1} parent=5 // pred_check_branch
      %226 = sbr.rel (%p223) target = $region12
    $region11: #{tpu_custom_call.1} parent=5 // pred_region
      %s227 = ssub.s32 %s14, 1
      // Predicated region
      $region13: #{tpu_custom_call.1} parent=11 // pred_check
        %p228 = pneg %p61
      $region14: #{tpu_custom_call.1} parent=11 // pred_check_branch
        %230 = sbr.rel (%p228) target = $region16
      $region15: #{tpu_custom_call.1} parent=11 // pred_region
        _
      $region16: #{tpu_custom_call.1} parent=11 // pred_fallthru
        _
      // Predicated region
      $region17: #{tpu_custom_call.1} parent=11 // pred_check
        %p231 = pneg %p82
      $region18: #{tpu_custom_call.1} parent=11 // pred_check_branch
        %233 = sbr.rel (%p231) target = $region20
      $region19: #{tpu_custom_call.1} parent=11 // pred_region
        _
      $region20: #{tpu_custom_call.1} parent=11 // pred_fallthru
        _
      // Predicated region
      $region21: #{tpu_custom_call.1} parent=11 // pred_check
        %p234 = pneg %p103
      $region22: #{tpu_custom_call.1} parent=11 // pred_check_branch
        %236 = sbr.rel (%p234) target = $region24
      $region23: #{tpu_custom_call.1} parent=11 // pred_region
        _
      $region24: #{tpu_custom_call.1} parent=11 // pred_fallthru
        _
      // Predicated region
      $region25: #{tpu_custom_call.1} parent=11 // pred_check
        %p237 = pneg %p124
      $region26: #{tpu_custom_call.1} parent=11 // pred_check_branch
        %239 = sbr.rel (%p237) target = $region28
      $region27: #{tpu_custom_call.1} parent=11 // pred_region
        _
      $region28: #{tpu_custom_call.1} parent=11 // pred_fallthru
        _
      // Predicated region
      $region29: #{tpu_custom_call.1} parent=11 // pred_check
        %p240 = pneg %p145
      $region30: #{tpu_custom_call.1} parent=11 // pred_check_branch
        %242 = sbr.rel (%p240) target = $region32
      $region31: #{tpu_custom_call.1} parent=11 // pred_region
        _
      $region32: #{tpu_custom_call.1} parent=11 // pred_fallthru
        _
      // Predicated region
      $region33: #{tpu_custom_call.1} parent=11 // pred_check
        %p243 = pneg %p166
      $region34: #{tpu_custom_call.1} parent=11 // pred_check_branch
        %245 = sbr.rel (%p243) target = $region36
      $region35: #{tpu_custom_call.1} parent=11 // pred_region
        _
      $region36: #{tpu_custom_call.1} parent=11 // pred_fallthru
        _
      // Predicated region
      $region37: #{tpu_custom_call.1} parent=11 // pred_check
        %p246 = pneg %p187
      $region38: #{tpu_custom_call.1} parent=11 // pred_check_branch
        %248 = sbr.rel (%p246) target = $region40
      $region39: #{tpu_custom_call.1} parent=11 // pred_region
        _
      $region40: #{tpu_custom_call.1} parent=11 // pred_fallthru
        _
    $region12: #{tpu_custom_call.1} parent=5 // pred_fallthru
      _
    %p249 = scmp.lt.s32.totalorder %s14, 4
    // Predicated region
    $region41: #{tpu_custom_call.1} parent=5 // pred_check
      %p250 = pneg %p249
    $region42: #{tpu_custom_call.1} parent=5 // pred_check_branch
      %252 = sbr.rel (%p250) target = $region44
    $region43: #{tpu_custom_call.1} parent=5 // pred_region
      // Predicated region
      $region45: #{tpu_custom_call.1} parent=43 // pred_check
        %p253 = pneg %p34
      $region46: #{tpu_custom_call.1} parent=43 // pred_check_branch
        %255 = sbr.rel (%p253) target = $region48
      $region47: #{tpu_custom_call.1} parent=43 // pred_region
        %s256 = smul.u32 2, %s14
        %p257 = scmp.lt.s32.totalorder %s256, 7
        %s258 = scalar_select %p257, %s256, 7
        %s259 = smul.addr %s258, 2
        %s260 = smul.addr %s259, 8
        %s261 = scalar_lea.vmem %s0, %s260
        %s262 = smul.u32 2, %s14
      $region48: #{tpu_custom_call.1} parent=43 // pred_fallthru
        _
    $region44: #{tpu_custom_call.1} parent=5 // pred_fallthru
      _
    %p263 = scmp.le.s32.totalorder 1, %s14
    %p264 = scmp.lt.s32.totalorder %s14, 5
    %p265 = pnand %p263, %p264
    %p266 = pneg %p265
    // Predicated region
    $region49: #{tpu_custom_call.1} parent=5 // pred_check
      _
    $region50: #{tpu_custom_call.1} parent=5 // pred_check_branch
      %268 = sbr.rel (%p265) target = $region52
    $region51: #{tpu_custom_call.1} parent=5 // pred_region
      %s269 = ssub.s32 %s14, 1
      %s270 = smul.u32 2, %s19
      %p271 = scmp.lt.s32.totalorder %s270, 7
      %s272 = scalar_select %p271, %s270, 7
      %s273 = smul.addr %s272, 2
      %s274 = smul.addr %s273, 8
      %s275 = scalar_lea.vmem %s0, %s274
      %p276 = pneg %p40
      %p277 = pneg %p37
      %p278 = pneg %p61
      %p279 = pneg %p58
      %p280 = pneg %p82
      %p281 = pneg %p79
      %p282 = pneg %p103
      %p283 = pneg %p100
      %p284 = pneg %p124
      %p285 = pneg %p121
      %p286 = pneg %p145
      %p287 = pneg %p142
      %p288 = pneg %p166
      %p289 = pneg %p163
      %p290 = pneg %p187
      %p291 = pneg %p184
      %p292 = pneg %p213
      %p293 = pneg %p210
      %s294 = smul.u32 2, %s19
      %p295 = scmp.lt.s32.totalorder %s294, 7
      %s296 = scalar_select %p295, %s294, 7
      %s297 = smul.addr %s296, 2
      %s298 = smul.addr %s297, 8
      %s299 = scalar_lea.vmem %s8, %s298
      %s300 = smul.u32 2, %s19
      %p301 = scmp.lt.s32.totalorder %s300, 7
      %s302 = scalar_select %p301, %s300, 7
      %s303 = smul.addr %s302, 2
      %s304 = smul.addr %s303, 8
      %s305 = scalar_lea.vmem %s0, %s304
      %s306 = smul.u32 2, %s19
      %s307 = smul.u32 2, %s19
      %p308 = scmp.lt.s32.totalorder %s307, 7
      %s309 = scalar_select %p308, %s307, 7
      %s310 = smul.addr %s309, 2
      %s311 = smul.addr %s310, 8
      %s312 = scalar_lea.vmem %s8, %s311
      %s313 = smul.u32 2, %s19
      %v314 = vld [vmem:[%s1] sm:$0xff]
      %v315 = vld [vmem:[%s2] sm:$0xff]
      %v316 = vld [vmem:[%s2 + $0x8] sm:$0xff]
      %v317 = vld [vmem:[%s3] sm:$0xff]
      %v318 = vld [vmem:[%s4] sm:$0xff]
      %v319 = vld [vmem:[%s6] sm:$0xff]
      %v320 = vld [vmem:[%s6 + $0x8] sm:$0xff]
      %v321 = vld [vmem:[%s6 + $0x10] sm:$0xff]
      %v322 = vld [vmem:[%s6 + $0x18] sm:$0xff]
      %v323 = vld [vmem:[%s5] sm:$0x1]
      %v325 = vperm.slane %v323, 0
      %v327 = vld [vmem:[%s7] sm:$0x1]
      %v329 = vperm.slane %v327, 0
      %v331 = vld [vmem:[%s305] sm:$0xff]
      %v332 = vld [vmem:[%s305 + $0x8] sm:$0xff]
      %vm333 = vcmask 130048
      %v335 = vsel %vm333, %v314, 0
      %337 = vmatpush.msra.mxu0 0.0
      %338 = vmatpush.msra.mxu0 0.0
      %339 = vmatpush.msra.mxu0 0.0
      %340 = vmatpush.msra.mxu0 0.0
      %341 = vmatpush.msra.mxu0 0.0
      %342 = vmatpush.msra.mxu0 0.0
      %343 = vmatpush.msra.mxu0 0.0
      %344 = vmatpush.msra.mxu0 0.0
      %345 = vmatpush.msra.mxu0 0.0
      %346 = vmatpush.msra.mxu0 0.0
      %347 = vmatpush.msra.mxu0 0.0
      %348 = vmatpush.msra.mxu0 0.0
      %349 = vmatpush.msra.mxu0 0.0
      %350 = vmatpush.msra.mxu0 0.0
      %351 = vmatpush.msra.mxu0 %v332
      %352 = vmatpush.msra.mxu0 %v331
      %353 = vmatmul.f32.gmra.mxu0 %v335
      %v354 = vpop.f32.mrf.mxu0
      %v355 = vadd.f32 0.0, %v354
      %356 = vdwg.mxu0
      %vm357 = vcmask 64512
      %v359 = vsel %vm357, %v355, 0
      %361 = vmatpush.msra.mxu0 0.0
      %362 = vmatpush.msra.mxu0 0.0
      %363 = vmatpush.msra.mxu0 0.0
      %364 = vmatpush.msra.mxu0 0.0
      %365 = vmatpush.msra.mxu0 0.0
      %366 = vmatpush.msra.mxu0 0.0
      %367 = vmatpush.msra.mxu0 0.0
      %368 = vmatpush.msra.mxu0 0.0
      %369 = vmatpush.msra.mxu0 0.0
      %370 = vmatpush.msra.mxu0 0.0
      %371 = vmatpush.msra.mxu0 0.0
      %372 = vmatpush.msra.mxu0 0.0
      %373 = vmatpush.msra.mxu0 0.0
      %374 = vmatpush.msra.mxu0 0.0
      %375 = vmatpush.msra.mxu0 0.0
      %376 = vmatpush.msra.mxu0 %v318
      %377 = vmatmul.f32.gmra.mxu0 %v359
      %v378 = vpop.f32.mrf.mxu0
      %v379 = vadd.f32 0.0, %v378
      %380 = vdwg.mxu0
      %v382 = vsel %vm357, %v315, 0
      %v385 = vsel %vm357, %v316, 0
      %387 = vmatpush.msra.mxu0 0.0
      %388 = vmatpush.msra.mxu0 0.0
      %389 = vmatpush.msra.mxu0 0.0
      %390 = vmatpush.msra.mxu0 0.0
      %391 = vmatpush.msra.mxu0 0.0
      %392 = vmatpush.msra.mxu0 0.0
      %393 = vmatpush.msra.mxu0 0.0
      %394 = vmatpush.msra.mxu0 0.0
      %395 = vmatpush.msra.mxu0 0.0
      %396 = vmatpush.msra.mxu0 0.0
      %397 = vmatpush.msra.mxu0 0.0
      %398 = vmatpush.msra.mxu0 0.0
      %399 = vmatpush.msra.mxu0 0.0
      %400 = vmatpush.msra.mxu0 0.0
      %401 = vmatpush.msra.mxu0 0.0
      %402 = vmatpush.msra.mxu0 %v379
      %403 = vmatmul.f32.gmra.mxu0 %v382
      %v404 = vpop.f32.mrf.mxu0
      %v405 = vadd.f32 0.0, %v404
      %406 = vmatmul.f32.gmra.mxu0 %v385
      %v407 = vpop.f32.mrf.mxu0
      %v408 = vadd.f32 0.0, %v407
      %409 = vdwg.mxu0
      %v411 = vsel %vm357, %v331, 0
      %v414 = vsel %vm357, %v332, 0
      %416 = vmatpush.msra.mxu0 0.0
      %417 = vmatpush.msra.mxu0 0.0
      %418 = vmatpush.msra.mxu0 0.0
      %419 = vmatpush.msra.mxu0 0.0
      %420 = vmatpush.msra.mxu0 0.0
      %421 = vmatpush.msra.mxu0 0.0
      %422 = vmatpush.msra.mxu0 0.0
      %423 = vmatpush.msra.mxu0 0.0
      %424 = vmatpush.msra.mxu0 0.0
      %425 = vmatpush.msra.mxu0 0.0
      %426 = vmatpush.msra.mxu0 0.0
      %427 = vmatpush.msra.mxu0 0.0
      %428 = vmatpush.msra.mxu0 0.0
      %429 = vmatpush.msra.mxu0 0.0
      %430 = vmatpush.msra.mxu0 0.0
      %431 = vmatpush.msra.mxu0 %v317
      %432 = vmatmul.f32.gmra.mxu0 %v411
      %v433 = vpop.f32.mrf.mxu0
      %v434 = vadd.f32 %v405, %v433
      %435 = vmatmul.f32.gmra.mxu0 %v414
      %v436 = vpop.f32.mrf.mxu0
      %v437 = vadd.f32 %v408, %v436
      %438 = vdwg.mxu0
      %v439 = vadd.f32 %v434, %v325
      %v440 = vadd.f32 %v437, %v325
      %v441 = vmax.f32 %v439, 0.0
      %v442 = vmax.f32 %v440, 0.0
      %vm443 = vcmask 261120
      %v445 = vsel %vm443, %v441, 0
      %v448 = vsel %vm443, %v442, 0
      %450 = vmatpush.msra.mxu0 0.0
      %451 = vmatpush.msra.mxu0 0.0
      %452 = vmatpush.msra.mxu0 0.0
      %453 = vmatpush.msra.mxu0 0.0
      %454 = vmatpush.msra.mxu0 0.0
      %455 = vmatpush.msra.mxu0 0.0
      %456 = vmatpush.msra.mxu0 0.0
      %457 = vmatpush.msra.mxu0 0.0
      %458 = vmatpush.msra.mxu0 0.0
      %459 = vmatpush.msra.mxu0 0.0
      %460 = vmatpush.msra.mxu0 0.0
      %461 = vmatpush.msra.mxu0 0.0
      %462 = vmatpush.msra.mxu0 %v322
      %463 = vmatpush.msra.mxu0 %v321
      %464 = vmatpush.msra.mxu0 %v320
      %465 = vmatpush.msra.mxu0 %v319
      %466 = vmatmul.f32.gmra.mxu0 %v445
      %v467 = vpop.f32.mrf.mxu0
      %v468 = vadd.f32 %v329, %v467
      %469 = vmatmul.f32.gmra.mxu0 %v448
      %v470 = vpop.f32.mrf.mxu0
      %v471 = vadd.f32 %v329, %v470
      %472 = vdwg.mxu0
      %473 = vst.msk [vmem:[%s312] sm:$0xff] %vm357, %v468
      %474 = vst.msk [vmem:[%s312 + $0x8] sm:$0xff] %vm357, %v471
      %s475 = scalar_lea.vmem %s305, 16
      %v476 = vld [vmem:[%s475] sm:$0xff]
      %v477 = vld [vmem:[%s475 + $0x8] sm:$0xff]
      %478 = vmatpush.msra.mxu0 0.0
      %479 = vmatpush.msra.mxu0 0.0
      %480 = vmatpush.msra.mxu0 0.0
      %481 = vmatpush.msra.mxu0 0.0
      %482 = vmatpush.msra.mxu0 0.0
      %483 = vmatpush.msra.mxu0 0.0
      %484 = vmatpush.msra.mxu0 0.0
      %485 = vmatpush.msra.mxu0 0.0
      %486 = vmatpush.msra.mxu0 0.0
      %487 = vmatpush.msra.mxu0 0.0
      %488 = vmatpush.msra.mxu0 0.0
      %489 = vmatpush.msra.mxu0 0.0
      %490 = vmatpush.msra.mxu0 0.0
      %491 = vmatpush.msra.mxu0 0.0
      %492 = vmatpush.msra.mxu0 %v477
      %493 = vmatpush.msra.mxu0 %v476
      %494 = vmatmul.f32.gmra.mxu0 %v335
      %v495 = vpop.f32.mrf.mxu0
      %v496 = vadd.f32 0.0, %v495
      %497 = vdwg.mxu0
      %v499 = vsel %vm357, %v496, 0
      %501 = vmatpush.msra.mxu0 0.0
      %502 = vmatpush.msra.mxu0 0.0
      %503 = vmatpush.msra.mxu0 0.0
      %504 = vmatpush.msra.mxu0 0.0
      %505 = vmatpush.msra.mxu0 0.0
      %506 = vmatpush.msra.mxu0 0.0
      %507 = vmatpush.msra.mxu0 0.0
      %508 = vmatpush.msra.mxu0 0.0
      %509 = vmatpush.msra.mxu0 0.0
      %510 = vmatpush.msra.mxu0 0.0
      %511 = vmatpush.msra.mxu0 0.0
      %512 = vmatpush.msra.mxu0 0.0
      %513 = vmatpush.msra.mxu0 0.0
      %514 = vmatpush.msra.mxu0 0.0
      %515 = vmatpush.msra.mxu0 0.0
      %516 = vmatpush.msra.mxu0 %v318
      %517 = vmatmul.f32.gmra.mxu0 %v499
      %v518 = vpop.f32.mrf.mxu0
      %v519 = vadd.f32 0.0, %v518
      %520 = vdwg.mxu0
      %521 = vmatpush.msra.mxu0 0.0
      %522 = vmatpush.msra.mxu0 0.0
      %523 = vmatpush.msra.mxu0 0.0
      %524 = vmatpush.msra.mxu0 0.0
      %525 = vmatpush.msra.mxu0 0.0
      %526 = vmatpush.msra.mxu0 0.0
      %527 = vmatpush.msra.mxu0 0.0
      %528 = vmatpush.msra.mxu0 0.0
      %529 = vmatpush.msra.mxu0 0.0
      %530 = vmatpush.msra.mxu0 0.0
      %531 = vmatpush.msra.mxu0 0.0
      %532 = vmatpush.msra.mxu0 0.0
      %533 = vmatpush.msra.mxu0 0.0
      %534 = vmatpush.msra.mxu0 0.0
      %535 = vmatpush.msra.mxu0 0.0
      %536 = vmatpush.msra.mxu0 %v519
      %537 = vmatmul.f32.gmra.mxu0 %v382
      %v538 = vpop.f32.mrf.mxu0
      %v539 = vadd.f32 0.0, %v538
      %540 = vmatmul.f32.gmra.mxu0 %v385
      %v541 = vpop.f32.mrf.mxu0
      %v542 = vadd.f32 0.0, %v541
      %543 = vdwg.mxu0
      %v545 = vsel %vm357, %v476, 0
      %v548 = vsel %vm357, %v477, 0
      %550 = vmatpush.msra.mxu0 0.0
      %551 = vmatpush.msra.mxu0 0.0
      %552 = vmatpush.msra.mxu0 0.0
      %553 = vmatpush.msra.mxu0 0.0
      %554 = vmatpush.msra.mxu0 0.0
      %555 = vmatpush.msra.mxu0 0.0
      %556 = vmatpush.msra.mxu0 0.0
      %557 = vmatpush.msra.mxu0 0.0
      %558 = vmatpush.msra.mxu0 0.0
      %559 = vmatpush.msra.mxu0 0.0
      %560 = vmatpush.msra.mxu0 0.0
      %561 = vmatpush.msra.mxu0 0.0
      %562 = vmatpush.msra.mxu0 0.0
      %563 = vmatpush.msra.mxu0 0.0
      %564 = vmatpush.msra.mxu0 0.0
      %565 = vmatpush.msra.mxu0 %v317
      %566 = vmatmul.f32.gmra.mxu0 %v545
      %v567 = vpop.f32.mrf.mxu0
      %v568 = vadd.f32 %v539, %v567
      %569 = vmatmul.f32.gmra.mxu0 %v548
      %v570 = vpop.f32.mrf.mxu0
      %v571 = vadd.f32 %v542, %v570
      %572 = vdwg.mxu0
      %v573 = vadd.f32 %v568, %v325
      %v574 = vadd.f32 %v571, %v325
      %v575 = vmax.f32 %v573, 0.0
      %v576 = vmax.f32 %v574, 0.0
      %v578 = vsel %vm443, %v575, 0
      %v581 = vsel %vm443, %v576, 0
      %583 = vmatpush.msra.mxu0 0.0
      %584 = vmatpush.msra.mxu0 0.0
      %585 = vmatpush.msra.mxu0 0.0
      %586 = vmatpush.msra.mxu0 0.0
      %587 = vmatpush.msra.mxu0 0.0
      %588 = vmatpush.msra.mxu0 0.0
      %589 = vmatpush.msra.mxu0 0.0
      %590 = vmatpush.msra.mxu0 0.0
      %591 = vmatpush.msra.mxu0 0.0
      %592 = vmatpush.msra.mxu0 0.0
      %593 = vmatpush.msra.mxu0 0.0
      %594 = vmatpush.msra.mxu0 0.0
      %595 = vmatpush.msra.mxu0 %v322
      %596 = vmatpush.msra.mxu0 %v321
      %597 = vmatpush.msra.mxu0 %v320
      %598 = vmatpush.msra.mxu0 %v319
      %599 = vmatmul.f32.gmra.mxu0 %v578
      %v600 = vpop.f32.mrf.mxu0
      %v601 = vadd.f32 %v329, %v600
      %602 = vmatmul.f32.gmra.mxu0 %v581
      %v603 = vpop.f32.mrf.mxu0
      %v604 = vadd.f32 %v329, %v603
      %605 = vdwg.mxu0
      %s606 = scalar_lea.vmem %s312, 16
      %607 = vst.msk [vmem:[%s606] sm:$0xff] %vm357, %v601
      %608 = vst.msk [vmem:[%s606 + $0x8] sm:$0xff] %vm357, %v604
      %s609 = smul.u32 2, %s19
      %p610 = scmp.lt.s32.totalorder %s609, 7
      %s611 = scalar_select %p610, %s609, 7
      %s612 = smul.addr %s611, 2
      %s613 = smul.addr %s612, 8
      %s614 = scalar_lea.vmem %s8, %s613
      // Predicated region
      $region53: #{tpu_custom_call.1} parent=51 // pred_check
        %p615 = pneg %p210
      $region54: #{tpu_custom_call.1} parent=51 // pred_check_branch
        %617 = sbr.rel (%p615) target = $region56
      $region55: #{tpu_custom_call.1} parent=51 // pred_region
        %s618 = smul.u32 2, %s19
      $region56: #{tpu_custom_call.1} parent=51 // pred_fallthru
        _
    $region52: #{tpu_custom_call.1} parent=5 // pred_fallthru
      _
    %p619 = scmp.le.s32.totalorder 2, %s14
    // Predicated region
    $region57: #{tpu_custom_call.1} parent=5 // pred_check
      %p620 = pneg %p619
    $region58: #{tpu_custom_call.1} parent=5 // pred_check_branch
      %622 = sbr.rel (%p620) target = $region60
    $region59: #{tpu_custom_call.1} parent=5 // pred_region
      %s623 = ssub.s32 %s14, 2
      // Predicated region
      $region61: #{tpu_custom_call.1} parent=59 // pred_check
        %p624 = pneg %p216
      $region62: #{tpu_custom_call.1} parent=59 // pred_check_branch
        %626 = sbr.rel (%p624) target = $region64
      $region63: #{tpu_custom_call.1} parent=59 // pred_region
        %s627 = smul.u32 2, %s20
        %p628 = scmp.lt.s32.totalorder %s627, 7
        %s629 = scalar_select %p628, %s627, 7
        %s630 = smul.addr %s629, 2
        %s631 = smul.addr %s630, 8
        %s632 = scalar_lea.vmem %s8, %s631
      $region64: #{tpu_custom_call.1} parent=59 // pred_fallthru
        _
    $region60: #{tpu_custom_call.1} parent=5 // pred_fallthru
      _
  $region6: #{tpu_custom_call.1} parent=0 // loop_footer
    %s18 = sadd.s32 1, %s14
  $region7: #{tpu_custom_call.1} parent=0 // loop_footer_branch
    %13 = sbr.rel target = $region3
  $region8: #{tpu_custom_call.1} parent=0 // loop_exit
    _

</llo_original>
